<compile_context>
chip_gen: v6e
topology: v6e:2x2x1
jax: 0.10.0
libtpu: 0.0.40
codegen_flags: <defaults>
</compile_context>

<pallas_src>
import functools

import jax
import jax.numpy as jnp
from jax import lax
from jax.experimental import pallas as pl
from jax.experimental.pallas import tpu as pltpu


def _attention_kernel(xq_ref, kv_src_ref, wq_ref, wkv_ref, qb_ref, kvb_ref,
                      wp_ref, bp_ref, o_ref,
                      q_s, k_s, v_s, m_s, l_s, acc_s,
                      *, num_heads, head_dim, scale):
    """One (batch, q-tile, kv-tile) grid step.

    xq_ref     : (1, TQ, C)      query rows (block index constant along kv axis)
    kv_src_ref : (1, TKV, Cc)    key/value source rows for this kv tile
    wq_ref     : (C, AHD), wkv_ref: (Cc, 2*AHD), wp_ref: (H, D, dim)  -- compute dtype
    qb/kvb/bp  : (1, AHD)/(1, 2*AHD)/(1, dim)                         -- float32
    o_ref      : (1, TQ, dim)    written only at the last kv step
    q_s/k_s/v_s: (H, TQ|TKV, D)  compute-dtype scratch, lane-aligned per head
    m_s/l_s    : (H, TQ, 1) f32  running max / denominator
    acc_s      : (H, TQ, D) f32  running weighted-value accumulator
    """
    ahd = num_heads * head_dim
    kvi = pl.program_id(2)
    n_kv = pl.num_programs(2)
    cdtype = wq_ref.dtype

    # ---- init (first kv step): project q once per q-tile, reset accumulators ----
    @pl.when(kvi == 0)
    def _init():
        q = jnp.dot(xq_ref[0].astype(cdtype), wq_ref[...],
                    preferred_element_type=jnp.float32)               # (TQ, AHD)
        q = (q + qb_ref[...]) * scale                                 # scale once
        for h in range(num_heads):                                    # scatter per head
            lo = h * head_dim
            q_s[h] = q[:, lo:lo + head_dim].astype(q_s.dtype)
        m_s[...] = jnp.full(m_s.shape, -jnp.inf, dtype=m_s.dtype)
        l_s[...] = jnp.zeros(l_s.shape, dtype=l_s.dtype)
        acc_s[...] = jnp.zeros(acc_s.shape, dtype=acc_s.dtype)

    # ---- kv projection for this kv tile: one full-width MXU matmul --------------
    kv = jnp.dot(kv_src_ref[0].astype(cdtype), wkv_ref[...],
                 preferred_element_type=jnp.float32) + kvb_ref[...]   # (TKV, 2*AHD)
    for h in range(num_heads):
        lo = h * head_dim
        k_s[h] = kv[:, lo:lo + head_dim].astype(k_s.dtype)
        v_s[h] = kv[:, ahd + lo:ahd + lo + head_dim].astype(v_s.dtype)

    # ---- per-head online softmax; all state lives in VMEM scratch ---------------
    def head_body(h, carry):
        qh = q_s[h]                                                   # (TQ, D)
        kh = k_s[h]                                                   # (TKV, D)
        vh = v_s[h]
        # contraction on the last dim of both operands -> no explicit kh.T
        s = lax.dot_general(qh, kh,
                            dimension_numbers=(((1,), (1,)), ((), ())),
                            preferred_element_type=jnp.float32)       # (TQ, TKV) f32
        m_prev = m_s[h]
        m_new = jnp.maximum(m_prev, jnp.max(s, axis=-1, keepdims=True))
        alpha = jnp.exp(m_prev - m_new)
        p = jnp.exp(s - m_new)
        l_s[h] = alpha * l_s[h] + jnp.sum(p, axis=-1, keepdims=True)
        # attn_drop: p = 0.0 (eval) -> identity
        acc_s[h] = alpha * acc_s[h] + jnp.dot(p.astype(vh.dtype), vh,
                                              preferred_element_type=jnp.float32)
        m_s[h] = m_new
        return carry

    lax.fori_loop(0, num_heads, head_body, 0, unroll=True)

    # ---- finalize (last kv step): normalize + per-head output projection --------
    @pl.when(kvi == n_kv - 1)
    def _finalize():
        tq = acc_s.shape[1]
        dim = wp_ref.shape[2]

        def proj_body(h, y):
            inv_l = pl.reciprocal(l_s[h], approx=True)                # (TQ, 1)
            oh = (acc_s[h] * inv_l).astype(cdtype)                    # (TQ, D)
            return y + jnp.dot(oh, wp_ref[h], preferred_element_type=jnp.float32)

        y = lax.fori_loop(0, num_heads, proj_body,
                          jnp.zeros((tq, dim), jnp.float32), unroll=True)
        # proj_drop: p = 0.0 (eval) -> identity
        o_ref[0] = (y + bp_ref[...]).astype(o_ref.dtype)


def _pick_tile(t, max_tile):
    """Largest tile <= max_tile keeping blocks (8,128)-legal (divisor of t)."""
    if t <= max_tile:
        return t
    for cand in (512, 384, 256, 192, 128, 64, 32, 16, 8):
        if cand <= max_tile and t % cand == 0:
            return cand
    # TODO(synk): pad + mask awkward sequence lengths instead of falling back to a
    # whole-sequence tile (can exceed the VMEM budget for large prime-ish T).
    return t


def _vmem_capacity_bytes():
    try:
        info = pltpu.get_tpu_info()
        cap = getattr(info, "vmem_capacity_bytes", None)
        if cap:
            return int(cap)
    except Exception:
        pass
    return 64 * 1024 * 1024          # conservative: v7x per-TensorCore VMEM


def _invariant_spec(shape):
    """Grid-invariant (weight/bias) BlockSpec, single-buffered when supported."""
    zeros = (0,) * len(shape)
    index_map = lambda b, qi, kv, _z=zeros: _z
    try:
        return pl.BlockSpec(shape, index_map, pipeline_mode=pl.Buffered(1))
    except Exception:                 # pipeline_mode / Buffered unavailable
        return pl.BlockSpec(shape, index_map)


def general_attention(x, context, wq, wkv, q_bias, v_bias, wproj, bproj, *,
                      num_heads, qk_scale=None, q_tile=None, kv_tile=None,
                      mxu_dtype=None):
    """Pallas implementation of GeneralAttention.forward (eval mode).

    x:        (B, T1, C)
    context:  (B, T2, Cc) or None (self-attention)
    wq:       (C,  AHD)    pre-transposed torch q.weight
    wkv:      (Cc, 2*AHD)  pre-transposed torch kv.weight
    q_bias, v_bias: (AHD,) or None (qkv_bias=False)
    wproj:    (AHD, dim), bproj: (dim,)
    mxu_dtype: optional MXU-operand dtype (e.g. jnp.bfloat16); f32 accumulation.
    """
    B, T1, C = x.shape
    ctx = x if context is None else context
    _, T2, Cc = ctx.shape
    ahd = wq.shape[1]
    head_dim = ahd // num_heads
    dim = wproj.shape[1]
    scale = float(qk_scale) if qk_scale is not None else float(head_dim) ** (-0.5)
    out_dtype = x.dtype

    # Compute/weight dtype (optionally bf16 for full-rate MXU + halved footprint).
    cdtype = jnp.dtype(mxu_dtype) if mxu_dtype is not None else x.dtype
    x_in = x.astype(cdtype)
    ctx_in = ctx.astype(cdtype)
    wq_c = wq.astype(cdtype)
    wkv_c = wkv.astype(cdtype)
    wp_c = wproj.reshape(num_heads, head_dim, dim).astype(cdtype)   # per-head slabs

    if q_bias is None:
        q_bias = jnp.zeros((ahd,), jnp.float32)
    if v_bias is None:
        v_bias = jnp.zeros((ahd,), jnp.float32)
    qb = q_bias.reshape(1, ahd).astype(jnp.float32)
    # kv bias = concat(zeros_like(v_bias), v_bias): k gets no bias, v gets v_bias.
    kvb = jnp.concatenate([jnp.zeros_like(v_bias), v_bias]).reshape(1, 2 * ahd)
    kvb = kvb.astype(jnp.float32)
    bp = bproj.reshape(1, dim).astype(jnp.float32)

    vmem_cap = _vmem_capacity_bytes()
    big_vmem = vmem_cap >= 96 * 1024 * 1024       # v5e / v6e (128 MiB per core)
    max_tile = 512 if big_vmem else 256
    tq = q_tile if q_tile is not None else _pick_tile(T1, max_tile)
    tkv = kv_tile if kv_tile is not None else _pick_tile(T2, max_tile)
    assert T1 % tq == 0 and T2 % tkv == 0, "tiles must divide sequence lengths"

    n_qt, n_kv = T1 // tq, T2 // tkv
    grid = (B, n_qt, n_kv)

    citem = jnp.dtype(cdtype).itemsize
    oitem = jnp.dtype(out_dtype).itemsize
    pD = -(-head_dim // 128) * 128                # lane-padded head_dim

    # VMEM budget: double-buffered activation blocks + single-buffered weights
    # + scratch (lane padding included) + f32 intermediates, with 2x slack.
    act_bytes = 2 * citem * (tq * C + tkv * Cc) + 2 * oitem * tq * dim
    w_bytes = citem * (C * ahd + Cc * 2 * ahd + ahd * dim) + 4 * (3 * ahd + dim)
    scr_bytes = (citem * num_heads * (tq + 2 * tkv) * pD
                 + 4 * num_heads * tq * (pD + 2 * 128))
    interm_bytes = 4 * (tkv * 2 * ahd + tq * ahd + 2 * tq * tkv + 2 * tq * dim)
    need = act_bytes + w_bytes + scr_bytes + interm_bytes
    vmem_limit = int(min(max(2 * need, 32 * 1024 * 1024), int(0.85 * vmem_cap)))

    scratch_shapes = [
        pltpu.VMEM((num_heads, tq, head_dim), cdtype),        # q   (per head)
        pltpu.VMEM((num_heads, tkv, head_dim), cdtype),       # k
        pltpu.VMEM((num_heads, tkv, head_dim), cdtype),       # v
        pltpu.VMEM((num_heads, tq, 1), jnp.float32),          # running max
        pltpu.VMEM((num_heads, tq, 1), jnp.float32),          # running denom
        pltpu.VMEM((num_heads, tq, head_dim), jnp.float32),   # running output acc
    ]

    in_specs = [
        pl.BlockSpec((1, tq, C), lambda b, qi, kv: (b, qi, 0)),     # query rows
        pl.BlockSpec((1, tkv, Cc), lambda b, qi, kv: (b, kv, 0)),   # kv-source rows
        _invariant_spec((C, ahd)),                # Wq^T
        _invariant_spec((Cc, 2 * ahd)),           # Wkv^T
        _invariant_spec((1, ahd)),                # q bias (f32)
        _invariant_spec((1, 2 * ahd)),            # kv bias (f32)
        _invariant_spec((num_heads, head_dim, dim)),   # Wproj^T per head
        _invariant_spec((1, dim)),                # proj bias (f32)
    ]
    out_spec = pl.BlockSpec((1, tq, dim), lambda b, qi, kv: (b, qi, 0))

    # Advisory cost estimate for XLA scheduling (kv projection recomputed per q-tile).
    flops = 2 * B * (T1 * C * ahd
                     + n_qt * T2 * Cc * 2 * ahd
                     + 2 * num_heads * T1 * T2 * head_dim
                     + T1 * ahd * dim)
    transcendentals = B * num_heads * T1 * (T2 + 2 * n_kv)
    bytes_accessed = (citem * (x_in.size + n_qt * ctx_in.size
                               + wq_c.size + wkv_c.size + wp_c.size)
                      + oitem * B * T1 * dim + 4 * (3 * ahd + dim))
    cost = pl.CostEstimate(flops=int(flops), transcendentals=int(transcendentals),
                           bytes_accessed=int(bytes_accessed))

    kernel = functools.partial(_attention_kernel, num_heads=num_heads,
                               head_dim=head_dim, scale=scale)

    return pl.pallas_call(
        kernel,
        out_shape=jax.ShapeDtypeStruct((B, T1, dim), out_dtype),
        grid_spec=pltpu.PrefetchScalarGridSpec(
            num_scalar_prefetch=0,
            grid=grid,
            in_specs=in_specs,
            out_specs=out_spec,
            scratch_shapes=scratch_shapes,
        ),
        compiler_params=pltpu.CompilerParams(
            dimension_semantics=("parallel", "parallel", "arbitrary"),
            vmem_limit_bytes=vmem_limit,
        ),
        cost_estimate=cost,
    )(x_in, ctx_in, wq_c, wkv_c, qb, kvb, wp_c, bp)


def _reference_attention(x, ctx, wq, wkv, q_bias, v_bias, wproj, bproj, num_heads):
    """Pure-JAX reference mirroring the PyTorch forward exactly (eval mode)."""
    B, T1, _ = x.shape
    T2 = ctx.shape[1]
    ahd = wq.shape[1]
    D = ahd // num_heads
    scale = D ** (-0.5)
    q = x @ wq + q_bias
    kvb = jnp.concatenate([jnp.zeros_like(v_bias), v_bias])
    kv = ctx @ wkv + kvb
    k, v = kv[..., :ahd], kv[..., ahd:]
    q = q.reshape(B, T1, num_heads, D).transpose(0, 2, 1, 3) * scale
    k = k.reshape(B, T2, num_heads, D).transpose(0, 2, 1, 3)
    v = v.reshape(B, T2, num_heads, D).transpose(0, 2, 1, 3)
    attn = jax.nn.softmax(q @ k.transpose(0, 1, 3, 2), axis=-1)
    out = (attn @ v).transpose(0, 2, 1, 3).reshape(B, T1, ahd)
    return out @ wproj + bproj


if __name__ == "__main__":
    # Small shapes consistent with the module: dim=32, num_heads=4 -> head_dim=8.
    B, T1, dim = 2, 16, 32
    num_heads = 4
    head_dim = dim // num_heads
    ahd = head_dim * num_heads
    T2, ctx_dim = 24, 48            # cross-attention context shape

    key = jax.random.PRNGKey(0)
    (kx, kc, kwq, kwkv, kwkv2, kqb, kvb, kwp, kbp) = jax.random.split(key, 9)

    x = jax.random.normal(kx, (B, T1, dim), dtype=jnp.float32)
    context = jax.random.normal(kc, (B, T2, ctx_dim), dtype=jnp.float32)

    # Deterministic parameters in the pre-transposed (in, out) layout.
    wq = jax.random.normal(kwq, (dim, ahd), dtype=jnp.float32) * 0.05
    wkv_self = jax.random.normal(kwkv, (dim, 2 * ahd), dtype=jnp.float32) * 0.05
    wkv_cross = jax.random.normal(kwkv2, (ctx_dim, 2 * ahd), dtype=jnp.float32) * 0.05
    q_bias = jax.random.normal(kqb, (ahd,), dtype=jnp.float32) * 0.05
    v_bias = jax.random.normal(kvb, (ahd,), dtype=jnp.float32) * 0.05
    wproj = jax.random.normal(kwp, (ahd, dim), dtype=jnp.float32) * 0.05
    bproj = jax.random.normal(kbp, (dim,), dtype=jnp.float32) * 0.05

    # --- self-attention (context=None): 2 q-tiles x 2 online-softmax kv steps ----
    out_self = general_attention(x, None, wq, wkv_self, q_bias, v_bias, wproj, bproj,
                                 num_heads=num_heads, q_tile=8, kv_tile=8)
    out_self = jax.block_until_ready(out_self)
    ref_self = _reference_attention(x, x, wq, wkv_self, q_bias, v_bias, wproj, bproj,
                                    num_heads)
    assert out_self.shape == (B, T1, dim)
    # Tolerance accounts for the approximate (EUP) softmax reciprocal.
    assert jnp.allclose(out_self, ref_self, atol=2e-3, rtol=2e-3), \
        "self-attention mismatch vs JAX reference"

    # --- cross-attention: 2 q-tiles x 3 online-softmax kv steps ------------------
    out_cross = general_attention(x, context, wq, wkv_cross, q_bias, v_bias, wproj,
                                  bproj, num_heads=num_heads, q_tile=8, kv_tile=8)
    out_cross = jax.block_until_ready(out_cross)
    ref_cross = _reference_attention(x, context, wq, wkv_cross, q_bias, v_bias, wproj,
                                     bproj, num_heads)
    assert out_cross.shape == (B, T1, dim)
    assert jnp.allclose(out_cross, ref_cross, atol=2e-3, rtol=2e-3), \
        "cross-attention mismatch vs JAX reference"

    # --- cross-attention with default tiling (single kv step) --------------------
    out_cross1 = general_attention(x, context, wq, wkv_cross, q_bias, v_bias, wproj,
                                   bproj, num_heads=num_heads)
    out_cross1 = jax.block_until_ready(out_cross1)
    assert jnp.allclose(out_cross1, ref_cross, atol=2e-3, rtol=2e-3), \
        "cross-attention (default tiling) mismatch vs JAX reference"

    # --- bf16 MXU-operand path (f32 accumulation), looser tolerance --------------
    out_bf16 = general_attention(x, context, wq, wkv_cross, q_bias, v_bias, wproj,
                                 bproj, num_heads=num_heads, q_tile=8, kv_tile=8,
                                 mxu_dtype=jnp.bfloat16)
    out_bf16 = jax.block_until_ready(out_bf16)
    assert out_bf16.dtype == x.dtype
    assert jnp.allclose(out_bf16, ref_cross, atol=3e-2, rtol=3e-2), \
        "bf16-MXU cross-attention mismatch vs JAX reference"

    print("KERNEL_OK")
</pallas_src>

<mosaic_0001>
module attributes {stable_mosaic.version = 11 : i64} {
  func.func @_attention_kernel(%arg0: i32, %arg1: i32, %arg2: i32, %arg3: memref<1x8x32xf32, #tpu.memory_space<vmem>>, %arg4: memref<1x8x32xf32, #tpu.memory_space<vmem>>, %arg5: memref<32x32xf32, #tpu.memory_space<vmem>>, %arg6: memref<32x64xf32, #tpu.memory_space<vmem>>, %arg7: memref<1x32xf32, #tpu.memory_space<vmem>>, %arg8: memref<1x64xf32, #tpu.memory_space<vmem>>, %arg9: memref<4x8x32xf32, #tpu.memory_space<vmem>>, %arg10: memref<1x32xf32, #tpu.memory_space<vmem>>, %arg11: memref<1x8x32xf32, #tpu.memory_space<vmem>>, %arg12: memref<4x8x8xf32, #tpu.memory_space<vmem>>, %arg13: memref<4x8x8xf32, #tpu.memory_space<vmem>>, %arg14: memref<4x8x8xf32, #tpu.memory_space<vmem>>, %arg15: memref<4x8x1xf32, #tpu.memory_space<vmem>>, %arg16: memref<4x8x1xf32, #tpu.memory_space<vmem>>, %arg17: memref<4x8x8xf32, #tpu.memory_space<vmem>>) attributes {dimension_semantics = [#tpu.dimension_semantics<parallel>, #tpu.dimension_semantics<parallel>, #tpu.dimension_semantics<arbitrary>], iteration_bounds = array<i64: 2, 2, 2>, scalar_prefetch = 0 : i64, scratch_operands = 6 : i64, tpu.core_type = #tpu.core_type<tc>, window_params = [{transform_indices = @transform_0, window_bounds = array<i64: 1, 8, 32>}, {transform_indices = @transform_1, window_bounds = array<i64: 1, 8, 32>}, {pipeline_mode = #tpu.pipeline_mode<synchronous>, transform_indices = @transform_2, window_bounds = array<i64: 32, 32>}, {pipeline_mode = #tpu.pipeline_mode<synchronous>, transform_indices = @transform_3, window_bounds = array<i64: 32, 64>}, {pipeline_mode = #tpu.pipeline_mode<synchronous>, transform_indices = @transform_4, window_bounds = array<i64: 1, 32>}, {pipeline_mode = #tpu.pipeline_mode<synchronous>, transform_indices = @transform_5, window_bounds = array<i64: 1, 64>}, {pipeline_mode = #tpu.pipeline_mode<synchronous>, transform_indices = @transform_6, window_bounds = array<i64: 4, 8, 32>}, {pipeline_mode = #tpu.pipeline_mode<synchronous>, transform_indices = @transform_7, window_bounds = array<i64: 1, 32>}, {transform_indices = @transform_8, window_bounds = array<i64: 1, 8, 32>}]} {
    %c0_i32 = arith.constant 0 : i32
    %0 = arith.cmpi eq, %arg2, %c0_i32 : i32
    %1 = arith.extui %0 : i1 to i32
    %c0_i32_0 = arith.constant 0 : i32
    %2 = arith.cmpi ne, %1, %c0_i32_0 : i32
    scf.if %2 {
      %c0_119 = arith.constant 0 : index
      %c0_120 = arith.constant 0 : index
      %c0_121 = arith.constant 0 : index
      %233 = vector.load %arg3[%c0_119, %c0_120, %c0_121] : memref<1x8x32xf32, #tpu.memory_space<vmem>>, vector<1x8x32xf32>
      %234 = vector.shape_cast %233 : vector<1x8x32xf32> to vector<8x32xf32>
      %c0_122 = arith.constant 0 : index
      %c0_123 = arith.constant 0 : index
      %235 = vector.load %arg5[%c0_122, %c0_123] : memref<32x32xf32, #tpu.memory_space<vmem>>, vector<32x32xf32>
      %cst_124 = arith.constant dense<0.000000e+00> : vector<8x32xf32>
      %236 = tpu.matmul %234, %235, %cst_124 {dimension_numbers = #tpu.dot_dimension_numbers<[1], [0], [0], [1], [0, 0, 1, 1], [], []>} : vector<8x32xf32>, vector<32x32xf32>, vector<8x32xf32> -> vector<8x32xf32>
      %c0_125 = arith.constant 0 : index
      %c0_126 = arith.constant 0 : index
      %237 = vector.load %arg7[%c0_125, %c0_126] : memref<1x32xf32, #tpu.memory_space<vmem>>, vector<1x32xf32>
      %238 = vector.broadcast %237 : vector<1x32xf32> to vector<8x32xf32>
      %239 = arith.addf %236, %238 : vector<8x32xf32>
      %cst_127 = arith.constant 0.353553385 : f32
      %240 = vector.broadcast %cst_127 : f32 to vector<8x32xf32>
      %241 = arith.mulf %239, %240 : vector<8x32xf32>
      %242 = vector.extract_strided_slice %241 {offsets = [0, 0], sizes = [8, 8], strides = [1, 1]} : vector<8x32xf32> to vector<8x8xf32>
      %c0_128 = arith.constant 0 : index
      %c0_129 = arith.constant 0 : index
      %c0_130 = arith.constant 0 : index
      %243 = vector.load %arg12[%c0_128, %c0_129, %c0_130] : memref<4x8x8xf32, #tpu.memory_space<vmem>>, vector<1x8x8xf32>
      %244 = vector.shape_cast %243 : vector<1x8x8xf32> to vector<8x8xf32>
      %245 = vector.shape_cast %242 : vector<8x8xf32> to vector<1x8x8xf32>
      tpu.vector_store %arg12[%c0_128, %c0_129, %c0_130], %245 {strides = array<i32>} : memref<4x8x8xf32, #tpu.memory_space<vmem>>, vector<1x8x8xf32>,
      %246 = vector.extract_strided_slice %241 {offsets = [0, 8], sizes = [8, 8], strides = [1, 1]} : vector<8x32xf32> to vector<8x8xf32>
      %c1_131 = arith.constant 1 : index
      %c0_132 = arith.constant 0 : index
      %c0_133 = arith.constant 0 : index
      %247 = vector.load %arg12[%c1_131, %c0_132, %c0_133] : memref<4x8x8xf32, #tpu.memory_space<vmem>>, vector<1x8x8xf32>
      %248 = vector.shape_cast %247 : vector<1x8x8xf32> to vector<8x8xf32>
      %249 = vector.shape_cast %246 : vector<8x8xf32> to vector<1x8x8xf32>
      tpu.vector_store %arg12[%c1_131, %c0_132, %c0_133], %249 {strides = array<i32>} : memref<4x8x8xf32, #tpu.memory_space<vmem>>, vector<1x8x8xf32>,
      %250 = vector.extract_strided_slice %241 {offsets = [0, 16], sizes = [8, 8], strides = [1, 1]} : vector<8x32xf32> to vector<8x8xf32>
      %c2_134 = arith.constant 2 : index
      %c0_135 = arith.constant 0 : index
      %c0_136 = arith.constant 0 : index
      %251 = vector.load %arg12[%c2_134, %c0_135, %c0_136] : memref<4x8x8xf32, #tpu.memory_space<vmem>>, vector<1x8x8xf32>
      %252 = vector.shape_cast %251 : vector<1x8x8xf32> to vector<8x8xf32>
      %253 = vector.shape_cast %250 : vector<8x8xf32> to vector<1x8x8xf32>
      tpu.vector_store %arg12[%c2_134, %c0_135, %c0_136], %253 {strides = array<i32>} : memref<4x8x8xf32, #tpu.memory_space<vmem>>, vector<1x8x8xf32>,
      %254 = vector.extract_strided_slice %241 {offsets = [0, 24], sizes = [8, 8], strides = [1, 1]} : vector<8x32xf32> to vector<8x8xf32>
      %c3_137 = arith.constant 3 : index
      %c0_138 = arith.constant 0 : index
      %c0_139 = arith.constant 0 : index
      %255 = vector.load %arg12[%c3_137, %c0_138, %c0_139] : memref<4x8x8xf32, #tpu.memory_space<vmem>>, vector<1x8x8xf32>
      %256 = vector.shape_cast %255 : vector<1x8x8xf32> to vector<8x8xf32>
      %257 = vector.shape_cast %254 : vector<8x8xf32> to vector<1x8x8xf32>
      tpu.vector_store %arg12[%c3_137, %c0_138, %c0_139], %257 {strides = array<i32>} : memref<4x8x8xf32, #tpu.memory_space<vmem>>, vector<1x8x8xf32>,
      %cst_140 = arith.constant 0xFF800000 : f32
      %258 = vector.broadcast %cst_140 : f32 to vector<4x8x1xf32>
      %c0_141 = arith.constant 0 : index
      %c0_142 = arith.constant 0 : index
      %c0_143 = arith.constant 0 : index
      %259 = vector.load %arg15[%c0_141, %c0_142, %c0_143] : memref<4x8x1xf32, #tpu.memory_space<vmem>>, vector<4x8x1xf32>
      tpu.vector_store %arg15[%c0_141, %c0_142, %c0_143], %258 {strides = array<i32>} : memref<4x8x1xf32, #tpu.memory_space<vmem>>, vector<4x8x1xf32>,
      %cst_144 = arith.constant 0.000000e+00 : f32
      %260 = vector.broadcast %cst_144 : f32 to vector<4x8x1xf32>
      %c0_145 = arith.constant 0 : index
      %c0_146 = arith.constant 0 : index
      %c0_147 = arith.constant 0 : index
      %261 = vector.load %arg16[%c0_145, %c0_146, %c0_147] : memref<4x8x1xf32, #tpu.memory_space<vmem>>, vector<4x8x1xf32>
      tpu.vector_store %arg16[%c0_145, %c0_146, %c0_147], %260 {strides = array<i32>} : memref<4x8x1xf32, #tpu.memory_space<vmem>>, vector<4x8x1xf32>,
      %cst_148 = arith.constant 0.000000e+00 : f32
      %262 = vector.broadcast %cst_148 : f32 to vector<4x8x8xf32>
      %c0_149 = arith.constant 0 : index
      %c0_150 = arith.constant 0 : index
      %c0_151 = arith.constant 0 : index
      %263 = vector.load %arg17[%c0_149, %c0_150, %c0_151] : memref<4x8x8xf32, #tpu.memory_space<vmem>>, vector<4x8x8xf32>
      tpu.vector_store %arg17[%c0_149, %c0_150, %c0_151], %262 {strides = array<i32>} : memref<4x8x8xf32, #tpu.memory_space<vmem>>, vector<4x8x8xf32>,
    } else {
    }
    %c0 = arith.constant 0 : index
    %c0_1 = arith.constant 0 : index
    %c0_2 = arith.constant 0 : index
    %3 = vector.load %arg4[%c0, %c0_1, %c0_2] : memref<1x8x32xf32, #tpu.memory_space<vmem>>, vector<1x8x32xf32>
    %4 = vector.shape_cast %3 : vector<1x8x32xf32> to vector<8x32xf32>
    %c0_3 = arith.constant 0 : index
    %c0_4 = arith.constant 0 : index
    %5 = vector.load %arg6[%c0_3, %c0_4] : memref<32x64xf32, #tpu.memory_space<vmem>>, vector<32x64xf32>
    %cst = arith.constant dense<0.000000e+00> : vector<8x64xf32>
    %6 = tpu.matmul %4, %5, %cst {dimension_numbers = #tpu.dot_dimension_numbers<[1], [0], [0], [1], [0, 0, 1, 1], [], []>} : vector<8x32xf32>, vector<32x64xf32>, vector<8x64xf32> -> vector<8x64xf32>
    %c0_5 = arith.constant 0 : index
    %c0_6 = arith.constant 0 : index
    %7 = vector.load %arg8[%c0_5, %c0_6] : memref<1x64xf32, #tpu.memory_space<vmem>>, vector<1x64xf32>
    %8 = vector.broadcast %7 : vector<1x64xf32> to vector<8x64xf32>
    %9 = arith.addf %6, %8 : vector<8x64xf32>
    %10 = vector.extract_strided_slice %9 {offsets = [0, 0], sizes = [8, 8], strides = [1, 1]} : vector<8x64xf32> to vector<8x8xf32>
    %c0_7 = arith.constant 0 : index
    %c0_8 = arith.constant 0 : index
    %c0_9 = arith.constant 0 : index
    %11 = vector.load %arg13[%c0_7, %c0_8, %c0_9] : memref<4x8x8xf32, #tpu.memory_space<vmem>>, vector<1x8x8xf32>
    %12 = vector.shape_cast %11 : vector<1x8x8xf32> to vector<8x8xf32>
    %13 = vector.shape_cast %10 : vector<8x8xf32> to vector<1x8x8xf32>
    tpu.vector_store %arg13[%c0_7, %c0_8, %c0_9], %13 {strides = array<i32>} : memref<4x8x8xf32, #tpu.memory_space<vmem>>, vector<1x8x8xf32>,
    %14 = vector.extract_strided_slice %9 {offsets = [0, 32], sizes = [8, 8], strides = [1, 1]} : vector<8x64xf32> to vector<8x8xf32>
    %c0_10 = arith.constant 0 : index
    %c0_11 = arith.constant 0 : index
    %c0_12 = arith.constant 0 : index
    %15 = vector.load %arg14[%c0_10, %c0_11, %c0_12] : memref<4x8x8xf32, #tpu.memory_space<vmem>>, vector<1x8x8xf32>
    %16 = vector.shape_cast %15 : vector<1x8x8xf32> to vector<8x8xf32>
    %17 = vector.shape_cast %14 : vector<8x8xf32> to vector<1x8x8xf32>
    tpu.vector_store %arg14[%c0_10, %c0_11, %c0_12], %17 {strides = array<i32>} : memref<4x8x8xf32, #tpu.memory_space<vmem>>, vector<1x8x8xf32>,
    %18 = vector.extract_strided_slice %9 {offsets = [0, 8], sizes = [8, 8], strides = [1, 1]} : vector<8x64xf32> to vector<8x8xf32>
    %c1 = arith.constant 1 : index
    %c0_13 = arith.constant 0 : index
    %c0_14 = arith.constant 0 : index
    %19 = vector.load %arg13[%c1, %c0_13, %c0_14] : memref<4x8x8xf32, #tpu.memory_space<vmem>>, vector<1x8x8xf32>
    %20 = vector.shape_cast %19 : vector<1x8x8xf32> to vector<8x8xf32>
    %21 = vector.shape_cast %18 : vector<8x8xf32> to vector<1x8x8xf32>
    tpu.vector_store %arg13[%c1, %c0_13, %c0_14], %21 {strides = array<i32>} : memref<4x8x8xf32, #tpu.memory_space<vmem>>, vector<1x8x8xf32>,
    %22 = vector.extract_strided_slice %9 {offsets = [0, 40], sizes = [8, 8], strides = [1, 1]} : vector<8x64xf32> to vector<8x8xf32>
    %c1_15 = arith.constant 1 : index
    %c0_16 = arith.constant 0 : index
    %c0_17 = arith.constant 0 : index
    %23 = vector.load %arg14[%c1_15, %c0_16, %c0_17] : memref<4x8x8xf32, #tpu.memory_space<vmem>>, vector<1x8x8xf32>
    %24 = vector.shape_cast %23 : vector<1x8x8xf32> to vector<8x8xf32>
    %25 = vector.shape_cast %22 : vector<8x8xf32> to vector<1x8x8xf32>
    tpu.vector_store %arg14[%c1_15, %c0_16, %c0_17], %25 {strides = array<i32>} : memref<4x8x8xf32, #tpu.memory_space<vmem>>, vector<1x8x8xf32>,
    %26 = vector.extract_strided_slice %9 {offsets = [0, 16], sizes = [8, 8], strides = [1, 1]} : vector<8x64xf32> to vector<8x8xf32>
    %c2 = arith.constant 2 : index
    %c0_18 = arith.constant 0 : index
    %c0_19 = arith.constant 0 : index
    %27 = vector.load %arg13[%c2, %c0_18, %c0_19] : memref<4x8x8xf32, #tpu.memory_space<vmem>>, vector<1x8x8xf32>
    %28 = vector.shape_cast %27 : vector<1x8x8xf32> to vector<8x8xf32>
    %29 = vector.shape_cast %26 : vector<8x8xf32> to vector<1x8x8xf32>
    tpu.vector_store %arg13[%c2, %c0_18, %c0_19], %29 {strides = array<i32>} : memref<4x8x8xf32, #tpu.memory_space<vmem>>, vector<1x8x8xf32>,
    %30 = vector.extract_strided_slice %9 {offsets = [0, 48], sizes = [8, 8], strides = [1, 1]} : vector<8x64xf32> to vector<8x8xf32>
    %c2_20 = arith.constant 2 : index
    %c0_21 = arith.constant 0 : index
    %c0_22 = arith.constant 0 : index
    %31 = vector.load %arg14[%c2_20, %c0_21, %c0_22] : memref<4x8x8xf32, #tpu.memory_space<vmem>>, vector<1x8x8xf32>
    %32 = vector.shape_cast %31 : vector<1x8x8xf32> to vector<8x8xf32>
    %33 = vector.shape_cast %30 : vector<8x8xf32> to vector<1x8x8xf32>
    tpu.vector_store %arg14[%c2_20, %c0_21, %c0_22], %33 {strides = array<i32>} : memref<4x8x8xf32, #tpu.memory_space<vmem>>, vector<1x8x8xf32>,
    %34 = vector.extract_strided_slice %9 {offsets = [0, 24], sizes = [8, 8], strides = [1, 1]} : vector<8x64xf32> to vector<8x8xf32>
    %c3 = arith.constant 3 : index
    %c0_23 = arith.constant 0 : index
    %c0_24 = arith.constant 0 : index
    %35 = vector.load %arg13[%c3, %c0_23, %c0_24] : memref<4x8x8xf32, #tpu.memory_space<vmem>>, vector<1x8x8xf32>
    %36 = vector.shape_cast %35 : vector<1x8x8xf32> to vector<8x8xf32>
    %37 = vector.shape_cast %34 : vector<8x8xf32> to vector<1x8x8xf32>
    tpu.vector_store %arg13[%c3, %c0_23, %c0_24], %37 {strides = array<i32>} : memref<4x8x8xf32, #tpu.memory_space<vmem>>, vector<1x8x8xf32>,
    %38 = vector.extract_strided_slice %9 {offsets = [0, 56], sizes = [8, 8], strides = [1, 1]} : vector<8x64xf32> to vector<8x8xf32>
    %c3_25 = arith.constant 3 : index
    %c0_26 = arith.constant 0 : index
    %c0_27 = arith.constant 0 : index
    %39 = vector.load %arg14[%c3_25, %c0_26, %c0_27] : memref<4x8x8xf32, #tpu.memory_space<vmem>>, vector<1x8x8xf32>
    %40 = vector.shape_cast %39 : vector<1x8x8xf32> to vector<8x8xf32>
    %41 = vector.shape_cast %38 : vector<8x8xf32> to vector<1x8x8xf32>
    tpu.vector_store %arg14[%c3_25, %c0_26, %c0_27], %41 {strides = array<i32>} : memref<4x8x8xf32, #tpu.memory_space<vmem>>, vector<1x8x8xf32>,
    %c0_i32_28 = arith.constant 0 : i32
    %42 = arith.index_cast %c0_i32_28 : i32 to index
    %c0_29 = arith.constant 0 : index
    %c0_30 = arith.constant 0 : index
    %43 = vector.load %arg12[%42, %c0_29, %c0_30] : memref<4x8x8xf32, #tpu.memory_space<vmem>>, vector<1x8x8xf32>
    %44 = vector.shape_cast %43 : vector<1x8x8xf32> to vector<8x8xf32>
    %45 = arith.index_cast %c0_i32_28 : i32 to index
    %c0_31 = arith.constant 0 : index
    %c0_32 = arith.constant 0 : index
    %46 = vector.load %arg13[%45, %c0_31, %c0_32] : memref<4x8x8xf32, #tpu.memory_space<vmem>>, vector<1x8x8xf32>
    %47 = vector.shape_cast %46 : vector<1x8x8xf32> to vector<8x8xf32>
    %48 = arith.index_cast %c0_i32_28 : i32 to index
    %c0_33 = arith.constant 0 : index
    %c0_34 = arith.constant 0 : index
    %49 = vector.load %arg14[%48, %c0_33, %c0_34] : memref<4x8x8xf32, #tpu.memory_space<vmem>>, vector<1x8x8xf32>
    %50 = vector.shape_cast %49 : vector<1x8x8xf32> to vector<8x8xf32>
    %cst_35 = arith.constant dense<0.000000e+00> : vector<8x8xf32>
    %51 = tpu.matmul %44, %47, %cst_35 {dimension_numbers = #tpu.dot_dimension_numbers<[1], [1], [0], [0], [0, 0, 1, 0], [], []>} : vector<8x8xf32>, vector<8x8xf32>, vector<8x8xf32> -> vector<8x8xf32>
    %52 = arith.index_cast %c0_i32_28 : i32 to index
    %c0_36 = arith.constant 0 : index
    %c0_37 = arith.constant 0 : index
    %53 = vector.load %arg15[%52, %c0_36, %c0_37] : memref<4x8x1xf32, #tpu.memory_space<vmem>>, vector<1x8x1xf32>
    %54 = vector.shape_cast %53 : vector<1x8x1xf32> to vector<8x1xf32>
    %cst_38 = arith.constant dense<0xFF800000> : vector<8xf32>
    %55 = vector.multi_reduction <maximumf>, %51, %cst_38 [1] : vector<8x8xf32> to vector<8xf32>
    %56 = vector.shape_cast %55 : vector<8xf32> to vector<8x1xf32>
    %57 = arith.maximumf %54, %56 : vector<8x1xf32>
    %58 = arith.subf %54, %57 : vector<8x1xf32>
    %59 = math.exp %58 : vector<8x1xf32>
    %60 = vector.broadcast %57 : vector<8x1xf32> to vector<8x8xf32>
    %61 = arith.subf %51, %60 : vector<8x8xf32>
    %62 = math.exp %61 : vector<8x8xf32>
    %63 = arith.index_cast %c0_i32_28 : i32 to index
    %c0_39 = arith.constant 0 : index
    %c0_40 = arith.constant 0 : index
    %64 = vector.load %arg16[%63, %c0_39, %c0_40] : memref<4x8x1xf32, #tpu.memory_space<vmem>>, vector<1x8x1xf32>
    %65 = vector.shape_cast %64 : vector<1x8x1xf32> to vector<8x1xf32>
    %66 = arith.mulf %59, %65 : vector<8x1xf32>
    %cst_41 = arith.constant dense<0.000000e+00> : vector<8xf32>
    %67 = vector.multi_reduction <add>, %62, %cst_41 [1] : vector<8x8xf32> to vector<8xf32>
    %68 = vector.shape_cast %67 : vector<8xf32> to vector<8x1xf32>
    %69 = arith.addf %66, %68 : vector<8x1xf32>
    %70 = arith.index_cast %c0_i32_28 : i32 to index
    %c0_42 = arith.constant 0 : index
    %c0_43 = arith.constant 0 : index
    %71 = vector.load %arg16[%70, %c0_42, %c0_43] : memref<4x8x1xf32, #tpu.memory_space<vmem>>, vector<1x8x1xf32>
    %72 = vector.shape_cast %71 : vector<1x8x1xf32> to vector<8x1xf32>
    %73 = vector.shape_cast %69 : vector<8x1xf32> to vector<1x8x1xf32>
    tpu.vector_store %arg16[%70, %c0_42, %c0_43], %73 {strides = array<i32>} : memref<4x8x1xf32, #tpu.memory_space<vmem>>, vector<1x8x1xf32>,
    %74 = arith.index_cast %c0_i32_28 : i32 to index
    %c0_44 = arith.constant 0 : index
    %c0_45 = arith.constant 0 : index
    %75 = vector.load %arg17[%74, %c0_44, %c0_45] : memref<4x8x8xf32, #tpu.memory_space<vmem>>, vector<1x8x8xf32>
    %76 = vector.shape_cast %75 : vector<1x8x8xf32> to vector<8x8xf32>
    %77 = vector.broadcast %59 : vector<8x1xf32> to vector<8x8xf32>
    %78 = arith.mulf %77, %76 : vector<8x8xf32>
    %cst_46 = arith.constant dense<0.000000e+00> : vector<8x8xf32>
    %79 = tpu.matmul %62, %50, %cst_46 {dimension_numbers = #tpu.dot_dimension_numbers<[1], [0], [0], [1], [0, 0, 1, 1], [], []>} : vector<8x8xf32>, vector<8x8xf32>, vector<8x8xf32> -> vector<8x8xf32>
    %80 = arith.addf %78, %79 : vector<8x8xf32>
    %81 = arith.index_cast %c0_i32_28 : i32 to index
    %c0_47 = arith.constant 0 : index
    %c0_48 = arith.constant 0 : index
    %82 = vector.load %arg17[%81, %c0_47, %c0_48] : memref<4x8x8xf32, #tpu.memory_space<vmem>>, vector<1x8x8xf32>
    %83 = vector.shape_cast %82 : vector<1x8x8xf32> to vector<8x8xf32>
    %84 = vector.shape_cast %80 : vector<8x8xf32> to vector<1x8x8xf32>
    tpu.vector_store %arg17[%81, %c0_47, %c0_48], %84 {strides = array<i32>} : memref<4x8x8xf32, #tpu.memory_space<vmem>>, vector<1x8x8xf32>,
    %85 = arith.index_cast %c0_i32_28 : i32 to index
    %c0_49 = arith.constant 0 : index
    %c0_50 = arith.constant 0 : index
    %86 = vector.load %arg15[%85, %c0_49, %c0_50] : memref<4x8x1xf32, #tpu.memory_space<vmem>>, vector<1x8x1xf32>
    %87 = vector.shape_cast %86 : vector<1x8x1xf32> to vector<8x1xf32>
    %88 = vector.shape_cast %57 : vector<8x1xf32> to vector<1x8x1xf32>
    tpu.vector_store %arg15[%85, %c0_49, %c0_50], %88 {strides = array<i32>} : memref<4x8x1xf32, #tpu.memory_space<vmem>>, vector<1x8x1xf32>,
    %c1_i32 = arith.constant 1 : i32
    %89 = arith.index_cast %c1_i32 : i32 to index
    %c0_51 = arith.constant 0 : index
    %c0_52 = arith.constant 0 : index
    %90 = vector.load %arg12[%89, %c0_51, %c0_52] : memref<4x8x8xf32, #tpu.memory_space<vmem>>, vector<1x8x8xf32>
    %91 = vector.shape_cast %90 : vector<1x8x8xf32> to vector<8x8xf32>
    %92 = arith.index_cast %c1_i32 : i32 to index
    %c0_53 = arith.constant 0 : index
    %c0_54 = arith.constant 0 : index
    %93 = vector.load %arg13[%92, %c0_53, %c0_54] : memref<4x8x8xf32, #tpu.memory_space<vmem>>, vector<1x8x8xf32>
    %94 = vector.shape_cast %93 : vector<1x8x8xf32> to vector<8x8xf32>
    %95 = arith.index_cast %c1_i32 : i32 to index
    %c0_55 = arith.constant 0 : index
    %c0_56 = arith.constant 0 : index
    %96 = vector.load %arg14[%95, %c0_55, %c0_56] : memref<4x8x8xf32, #tpu.memory_space<vmem>>, vector<1x8x8xf32>
    %97 = vector.shape_cast %96 : vector<1x8x8xf32> to vector<8x8xf32>
    %cst_57 = arith.constant dense<0.000000e+00> : vector<8x8xf32>
    %98 = tpu.matmul %91, %94, %cst_57 {dimension_numbers = #tpu.dot_dimension_numbers<[1], [1], [0], [0], [0, 0, 1, 0], [], []>} : vector<8x8xf32>, vector<8x8xf32>, vector<8x8xf32> -> vector<8x8xf32>
    %99 = arith.index_cast %c1_i32 : i32 to index
    %c0_58 = arith.constant 0 : index
    %c0_59 = arith.constant 0 : index
    %100 = vector.load %arg15[%99, %c0_58, %c0_59] : memref<4x8x1xf32, #tpu.memory_space<vmem>>, vector<1x8x1xf32>
    %101 = vector.shape_cast %100 : vector<1x8x1xf32> to vector<8x1xf32>
    %cst_60 = arith.constant dense<0xFF800000> : vector<8xf32>
    %102 = vector.multi_reduction <maximumf>, %98, %cst_60 [1] : vector<8x8xf32> to vector<8xf32>
    %103 = vector.shape_cast %102 : vector<8xf32> to vector<8x1xf32>
    %104 = arith.maximumf %101, %103 : vector<8x1xf32>
    %105 = arith.subf %101, %104 : vector<8x1xf32>
    %106 = math.exp %105 : vector<8x1xf32>
    %107 = vector.broadcast %104 : vector<8x1xf32> to vector<8x8xf32>
    %108 = arith.subf %98, %107 : vector<8x8xf32>
    %109 = math.exp %108 : vector<8x8xf32>
    %110 = arith.index_cast %c1_i32 : i32 to index
    %c0_61 = arith.constant 0 : index
    %c0_62 = arith.constant 0 : index
    %111 = vector.load %arg16[%110, %c0_61, %c0_62] : memref<4x8x1xf32, #tpu.memory_space<vmem>>, vector<1x8x1xf32>
    %112 = vector.shape_cast %111 : vector<1x8x1xf32> to vector<8x1xf32>
    %113 = arith.mulf %106, %112 : vector<8x1xf32>
    %cst_63 = arith.constant dense<0.000000e+00> : vector<8xf32>
    %114 = vector.multi_reduction <add>, %109, %cst_63 [1] : vector<8x8xf32> to vector<8xf32>
    %115 = vector.shape_cast %114 : vector<8xf32> to vector<8x1xf32>
    %116 = arith.addf %113, %115 : vector<8x1xf32>
    %117 = arith.index_cast %c1_i32 : i32 to index
    %c0_64 = arith.constant 0 : index
    %c0_65 = arith.constant 0 : index
    %118 = vector.load %arg16[%117, %c0_64, %c0_65] : memref<4x8x1xf32, #tpu.memory_space<vmem>>, vector<1x8x1xf32>
    %119 = vector.shape_cast %118 : vector<1x8x1xf32> to vector<8x1xf32>
    %120 = vector.shape_cast %116 : vector<8x1xf32> to vector<1x8x1xf32>
    tpu.vector_store %arg16[%117, %c0_64, %c0_65], %120 {strides = array<i32>} : memref<4x8x1xf32, #tpu.memory_space<vmem>>, vector<1x8x1xf32>,
    %121 = arith.index_cast %c1_i32 : i32 to index
    %c0_66 = arith.constant 0 : index
    %c0_67 = arith.constant 0 : index
    %122 = vector.load %arg17[%121, %c0_66, %c0_67] : memref<4x8x8xf32, #tpu.memory_space<vmem>>, vector<1x8x8xf32>
    %123 = vector.shape_cast %122 : vector<1x8x8xf32> to vector<8x8xf32>
    %124 = vector.broadcast %106 : vector<8x1xf32> to vector<8x8xf32>
    %125 = arith.mulf %124, %123 : vector<8x8xf32>
    %cst_68 = arith.constant dense<0.000000e+00> : vector<8x8xf32>
    %126 = tpu.matmul %109, %97, %cst_68 {dimension_numbers = #tpu.dot_dimension_numbers<[1], [0], [0], [1], [0, 0, 1, 1], [], []>} : vector<8x8xf32>, vector<8x8xf32>, vector<8x8xf32> -> vector<8x8xf32>
    %127 = arith.addf %125, %126 : vector<8x8xf32>
    %128 = arith.index_cast %c1_i32 : i32 to index
    %c0_69 = arith.constant 0 : index
    %c0_70 = arith.constant 0 : index
    %129 = vector.load %arg17[%128, %c0_69, %c0_70] : memref<4x8x8xf32, #tpu.memory_space<vmem>>, vector<1x8x8xf32>
    %130 = vector.shape_cast %129 : vector<1x8x8xf32> to vector<8x8xf32>
    %131 = vector.shape_cast %127 : vector<8x8xf32> to vector<1x8x8xf32>
    tpu.vector_store %arg17[%128, %c0_69, %c0_70], %131 {strides = array<i32>} : memref<4x8x8xf32, #tpu.memory_space<vmem>>, vector<1x8x8xf32>,
    %132 = arith.index_cast %c1_i32 : i32 to index
    %c0_71 = arith.constant 0 : index
    %c0_72 = arith.constant 0 : index
    %133 = vector.load %arg15[%132, %c0_71, %c0_72] : memref<4x8x1xf32, #tpu.memory_space<vmem>>, vector<1x8x1xf32>
    %134 = vector.shape_cast %133 : vector<1x8x1xf32> to vector<8x1xf32>
    %135 = vector.shape_cast %104 : vector<8x1xf32> to vector<1x8x1xf32>
    tpu.vector_store %arg15[%132, %c0_71, %c0_72], %135 {strides = array<i32>} : memref<4x8x1xf32, #tpu.memory_space<vmem>>, vector<1x8x1xf32>,
    %c2_i32 = arith.constant 2 : i32
    %136 = arith.index_cast %c2_i32 : i32 to index
    %c0_73 = arith.constant 0 : index
    %c0_74 = arith.constant 0 : index
    %137 = vector.load %arg12[%136, %c0_73, %c0_74] : memref<4x8x8xf32, #tpu.memory_space<vmem>>, vector<1x8x8xf32>
    %138 = vector.shape_cast %137 : vector<1x8x8xf32> to vector<8x8xf32>
    %139 = arith.index_cast %c2_i32 : i32 to index
    %c0_75 = arith.constant 0 : index
    %c0_76 = arith.constant 0 : index
    %140 = vector.load %arg13[%139, %c0_75, %c0_76] : memref<4x8x8xf32, #tpu.memory_space<vmem>>, vector<1x8x8xf32>
    %141 = vector.shape_cast %140 : vector<1x8x8xf32> to vector<8x8xf32>
    %142 = arith.index_cast %c2_i32 : i32 to index
    %c0_77 = arith.constant 0 : index
    %c0_78 = arith.constant 0 : index
    %143 = vector.load %arg14[%142, %c0_77, %c0_78] : memref<4x8x8xf32, #tpu.memory_space<vmem>>, vector<1x8x8xf32>
    %144 = vector.shape_cast %143 : vector<1x8x8xf32> to vector<8x8xf32>
    %cst_79 = arith.constant dense<0.000000e+00> : vector<8x8xf32>
    %145 = tpu.matmul %138, %141, %cst_79 {dimension_numbers = #tpu.dot_dimension_numbers<[1], [1], [0], [0], [0, 0, 1, 0], [], []>} : vector<8x8xf32>, vector<8x8xf32>, vector<8x8xf32> -> vector<8x8xf32>
    %146 = arith.index_cast %c2_i32 : i32 to index
    %c0_80 = arith.constant 0 : index
    %c0_81 = arith.constant 0 : index
    %147 = vector.load %arg15[%146, %c0_80, %c0_81] : memref<4x8x1xf32, #tpu.memory_space<vmem>>, vector<1x8x1xf32>
    %148 = vector.shape_cast %147 : vector<1x8x1xf32> to vector<8x1xf32>
    %cst_82 = arith.constant dense<0xFF800000> : vector<8xf32>
    %149 = vector.multi_reduction <maximumf>, %145, %cst_82 [1] : vector<8x8xf32> to vector<8xf32>
    %150 = vector.shape_cast %149 : vector<8xf32> to vector<8x1xf32>
    %151 = arith.maximumf %148, %150 : vector<8x1xf32>
    %152 = arith.subf %148, %151 : vector<8x1xf32>
    %153 = math.exp %152 : vector<8x1xf32>
    %154 = vector.broadcast %151 : vector<8x1xf32> to vector<8x8xf32>
    %155 = arith.subf %145, %154 : vector<8x8xf32>
    %156 = math.exp %155 : vector<8x8xf32>
    %157 = arith.index_cast %c2_i32 : i32 to index
    %c0_83 = arith.constant 0 : index
    %c0_84 = arith.constant 0 : index
    %158 = vector.load %arg16[%157, %c0_83, %c0_84] : memref<4x8x1xf32, #tpu.memory_space<vmem>>, vector<1x8x1xf32>
    %159 = vector.shape_cast %158 : vector<1x8x1xf32> to vector<8x1xf32>
    %160 = arith.mulf %153, %159 : vector<8x1xf32>
    %cst_85 = arith.constant dense<0.000000e+00> : vector<8xf32>
    %161 = vector.multi_reduction <add>, %156, %cst_85 [1] : vector<8x8xf32> to vector<8xf32>
    %162 = vector.shape_cast %161 : vector<8xf32> to vector<8x1xf32>
    %163 = arith.addf %160, %162 : vector<8x1xf32>
    %164 = arith.index_cast %c2_i32 : i32 to index
    %c0_86 = arith.constant 0 : index
    %c0_87 = arith.constant 0 : index
    %165 = vector.load %arg16[%164, %c0_86, %c0_87] : memref<4x8x1xf32, #tpu.memory_space<vmem>>, vector<1x8x1xf32>
    %166 = vector.shape_cast %165 : vector<1x8x1xf32> to vector<8x1xf32>
    %167 = vector.shape_cast %163 : vector<8x1xf32> to vector<1x8x1xf32>
    tpu.vector_store %arg16[%164, %c0_86, %c0_87], %167 {strides = array<i32>} : memref<4x8x1xf32, #tpu.memory_space<vmem>>, vector<1x8x1xf32>,
    %168 = arith.index_cast %c2_i32 : i32 to index
    %c0_88 = arith.constant 0 : index
    %c0_89 = arith.constant 0 : index
    %169 = vector.load %arg17[%168, %c0_88, %c0_89] : memref<4x8x8xf32, #tpu.memory_space<vmem>>, vector<1x8x8xf32>
    %170 = vector.shape_cast %169 : vector<1x8x8xf32> to vector<8x8xf32>
    %171 = vector.broadcast %153 : vector<8x1xf32> to vector<8x8xf32>
    %172 = arith.mulf %171, %170 : vector<8x8xf32>
    %cst_90 = arith.constant dense<0.000000e+00> : vector<8x8xf32>
    %173 = tpu.matmul %156, %144, %cst_90 {dimension_numbers = #tpu.dot_dimension_numbers<[1], [0], [0], [1], [0, 0, 1, 1], [], []>} : vector<8x8xf32>, vector<8x8xf32>, vector<8x8xf32> -> vector<8x8xf32>
    %174 = arith.addf %172, %173 : vector<8x8xf32>
    %175 = arith.index_cast %c2_i32 : i32 to index
    %c0_91 = arith.constant 0 : index
    %c0_92 = arith.constant 0 : index
    %176 = vector.load %arg17[%175, %c0_91, %c0_92] : memref<4x8x8xf32, #tpu.memory_space<vmem>>, vector<1x8x8xf32>
    %177 = vector.shape_cast %176 : vector<1x8x8xf32> to vector<8x8xf32>
    %178 = vector.shape_cast %174 : vector<8x8xf32> to vector<1x8x8xf32>
    tpu.vector_store %arg17[%175, %c0_91, %c0_92], %178 {strides = array<i32>} : memref<4x8x8xf32, #tpu.memory_space<vmem>>, vector<1x8x8xf32>,
    %179 = arith.index_cast %c2_i32 : i32 to index
    %c0_93 = arith.constant 0 : index
    %c0_94 = arith.constant 0 : index
    %180 = vector.load %arg15[%179, %c0_93, %c0_94] : memref<4x8x1xf32, #tpu.memory_space<vmem>>, vector<1x8x1xf32>
    %181 = vector.shape_cast %180 : vector<1x8x1xf32> to vector<8x1xf32>
    %182 = vector.shape_cast %151 : vector<8x1xf32> to vector<1x8x1xf32>
    tpu.vector_store %arg15[%179, %c0_93, %c0_94], %182 {strides = array<i32>} : memref<4x8x1xf32, #tpu.memory_space<vmem>>, vector<1x8x1xf32>,
    %c3_i32 = arith.constant 3 : i32
    %183 = arith.index_cast %c3_i32 : i32 to index
    %c0_95 = arith.constant 0 : index
    %c0_96 = arith.constant 0 : index
    %184 = vector.load %arg12[%183, %c0_95, %c0_96] : memref<4x8x8xf32, #tpu.memory_space<vmem>>, vector<1x8x8xf32>
    %185 = vector.shape_cast %184 : vector<1x8x8xf32> to vector<8x8xf32>
    %186 = arith.index_cast %c3_i32 : i32 to index
    %c0_97 = arith.constant 0 : index
    %c0_98 = arith.constant 0 : index
    %187 = vector.load %arg13[%186, %c0_97, %c0_98] : memref<4x8x8xf32, #tpu.memory_space<vmem>>, vector<1x8x8xf32>
    %188 = vector.shape_cast %187 : vector<1x8x8xf32> to vector<8x8xf32>
    %189 = arith.index_cast %c3_i32 : i32 to index
    %c0_99 = arith.constant 0 : index
    %c0_100 = arith.constant 0 : index
    %190 = vector.load %arg14[%189, %c0_99, %c0_100] : memref<4x8x8xf32, #tpu.memory_space<vmem>>, vector<1x8x8xf32>
    %191 = vector.shape_cast %190 : vector<1x8x8xf32> to vector<8x8xf32>
    %cst_101 = arith.constant dense<0.000000e+00> : vector<8x8xf32>
    %192 = tpu.matmul %185, %188, %cst_101 {dimension_numbers = #tpu.dot_dimension_numbers<[1], [1], [0], [0], [0, 0, 1, 0], [], []>} : vector<8x8xf32>, vector<8x8xf32>, vector<8x8xf32> -> vector<8x8xf32>
    %193 = arith.index_cast %c3_i32 : i32 to index
    %c0_102 = arith.constant 0 : index
    %c0_103 = arith.constant 0 : index
    %194 = vector.load %arg15[%193, %c0_102, %c0_103] : memref<4x8x1xf32, #tpu.memory_space<vmem>>, vector<1x8x1xf32>
    %195 = vector.shape_cast %194 : vector<1x8x1xf32> to vector<8x1xf32>
    %cst_104 = arith.constant dense<0xFF800000> : vector<8xf32>
    %196 = vector.multi_reduction <maximumf>, %192, %cst_104 [1] : vector<8x8xf32> to vector<8xf32>
    %197 = vector.shape_cast %196 : vector<8xf32> to vector<8x1xf32>
    %198 = arith.maximumf %195, %197 : vector<8x1xf32>
    %199 = arith.subf %195, %198 : vector<8x1xf32>
    %200 = math.exp %199 : vector<8x1xf32>
    %201 = vector.broadcast %198 : vector<8x1xf32> to vector<8x8xf32>
    %202 = arith.subf %192, %201 : vector<8x8xf32>
    %203 = math.exp %202 : vector<8x8xf32>
    %204 = arith.index_cast %c3_i32 : i32 to index
    %c0_105 = arith.constant 0 : index
    %c0_106 = arith.constant 0 : index
    %205 = vector.load %arg16[%204, %c0_105, %c0_106] : memref<4x8x1xf32, #tpu.memory_space<vmem>>, vector<1x8x1xf32>
    %206 = vector.shape_cast %205 : vector<1x8x1xf32> to vector<8x1xf32>
    %207 = arith.mulf %200, %206 : vector<8x1xf32>
    %cst_107 = arith.constant dense<0.000000e+00> : vector<8xf32>
    %208 = vector.multi_reduction <add>, %203, %cst_107 [1] : vector<8x8xf32> to vector<8xf32>
    %209 = vector.shape_cast %208 : vector<8xf32> to vector<8x1xf32>
    %210 = arith.addf %207, %209 : vector<8x1xf32>
    %211 = arith.index_cast %c3_i32 : i32 to index
    %c0_108 = arith.constant 0 : index
    %c0_109 = arith.constant 0 : index
    %212 = vector.load %arg16[%211, %c0_108, %c0_109] : memref<4x8x1xf32, #tpu.memory_space<vmem>>, vector<1x8x1xf32>
    %213 = vector.shape_cast %212 : vector<1x8x1xf32> to vector<8x1xf32>
    %214 = vector.shape_cast %210 : vector<8x1xf32> to vector<1x8x1xf32>
    tpu.vector_store %arg16[%211, %c0_108, %c0_109], %214 {strides = array<i32>} : memref<4x8x1xf32, #tpu.memory_space<vmem>>, vector<1x8x1xf32>,
    %215 = arith.index_cast %c3_i32 : i32 to index
    %c0_110 = arith.constant 0 : index
    %c0_111 = arith.constant 0 : index
    %216 = vector.load %arg17[%215, %c0_110, %c0_111] : memref<4x8x8xf32, #tpu.memory_space<vmem>>, vector<1x8x8xf32>
    %217 = vector.shape_cast %216 : vector<1x8x8xf32> to vector<8x8xf32>
    %218 = vector.broadcast %200 : vector<8x1xf32> to vector<8x8xf32>
    %219 = arith.mulf %218, %217 : vector<8x8xf32>
    %cst_112 = arith.constant dense<0.000000e+00> : vector<8x8xf32>
    %220 = tpu.matmul %203, %191, %cst_112 {dimension_numbers = #tpu.dot_dimension_numbers<[1], [0], [0], [1], [0, 0, 1, 1], [], []>} : vector<8x8xf32>, vector<8x8xf32>, vector<8x8xf32> -> vector<8x8xf32>
    %221 = arith.addf %219, %220 : vector<8x8xf32>
    %222 = arith.index_cast %c3_i32 : i32 to index
    %c0_113 = arith.constant 0 : index
    %c0_114 = arith.constant 0 : index
    %223 = vector.load %arg17[%222, %c0_113, %c0_114] : memref<4x8x8xf32, #tpu.memory_space<vmem>>, vector<1x8x8xf32>
    %224 = vector.shape_cast %223 : vector<1x8x8xf32> to vector<8x8xf32>
    %225 = vector.shape_cast %221 : vector<8x8xf32> to vector<1x8x8xf32>
    tpu.vector_store %arg17[%222, %c0_113, %c0_114], %225 {strides = array<i32>} : memref<4x8x8xf32, #tpu.memory_space<vmem>>, vector<1x8x8xf32>,
    %226 = arith.index_cast %c3_i32 : i32 to index
    %c0_115 = arith.constant 0 : index
    %c0_116 = arith.constant 0 : index
    %227 = vector.load %arg15[%226, %c0_115, %c0_116] : memref<4x8x1xf32, #tpu.memory_space<vmem>>, vector<1x8x1xf32>
    %228 = vector.shape_cast %227 : vector<1x8x1xf32> to vector<8x1xf32>
    %229 = vector.shape_cast %198 : vector<8x1xf32> to vector<1x8x1xf32>
    tpu.vector_store %arg15[%226, %c0_115, %c0_116], %229 {strides = array<i32>} : memref<4x8x1xf32, #tpu.memory_space<vmem>>, vector<1x8x1xf32>,
    %c4_i32 = arith.constant 4 : i32
    %c1_i32_117 = arith.constant 1 : i32
    %230 = arith.cmpi eq, %arg2, %c1_i32_117 : i32
    %231 = arith.extui %230 : i1 to i32
    %c0_i32_118 = arith.constant 0 : i32
    %232 = arith.cmpi ne, %231, %c0_i32_118 : i32
    scf.if %232 {
      %cst_119 = arith.constant 0.000000e+00 : f32
      %233 = vector.broadcast %cst_119 : f32 to vector<8x32xf32>
      %c0_i32_120 = arith.constant 0 : i32
      %234 = arith.index_cast %c0_i32_120 : i32 to index
      %c0_121 = arith.constant 0 : index
      %c0_122 = arith.constant 0 : index
      %235 = vector.load %arg16[%234, %c0_121, %c0_122] : memref<4x8x1xf32, #tpu.memory_space<vmem>>, vector<1x8x1xf32>
      %236 = vector.shape_cast %235 : vector<1x8x1xf32> to vector<8x1xf32>
      %237 = tpu.reciprocal %236 {approx = true} : vector<8x1xf32> -> vector<8x1xf32>
      %238 = arith.index_cast %c0_i32_120 : i32 to index
      %c0_123 = arith.constant 0 : index
      %c0_124 = arith.constant 0 : index
      %239 = vector.load %arg17[%238, %c0_123, %c0_124] : memref<4x8x8xf32, #tpu.memory_space<vmem>>, vector<1x8x8xf32>
      %240 = vector.shape_cast %239 : vector<1x8x8xf32> to vector<8x8xf32>
      %241 = vector.broadcast %237 : vector<8x1xf32> to vector<8x8xf32>
      %242 = arith.mulf %240, %241 : vector<8x8xf32>
      %243 = arith.index_cast %c0_i32_120 : i32 to index
      %c0_125 = arith.constant 0 : index
      %c0_126 = arith.constant 0 : index
      %244 = vector.load %arg9[%243, %c0_125, %c0_126] : memref<4x8x32xf32, #tpu.memory_space<vmem>>, vector<1x8x32xf32>
      %245 = vector.shape_cast %244 : vector<1x8x32xf32> to vector<8x32xf32>
      %cst_127 = arith.constant dense<0.000000e+00> : vector<8x32xf32>
      %246 = tpu.matmul %242, %245, %cst_127 {dimension_numbers = #tpu.dot_dimension_numbers<[1], [0], [0], [1], [0, 0, 1, 1], [], []>} : vector<8x8xf32>, vector<8x32xf32>, vector<8x32xf32> -> vector<8x32xf32>
      %247 = arith.addf %233, %246 : vector<8x32xf32>
      %c1_i32_128 = arith.constant 1 : i32
      %248 = arith.index_cast %c1_i32_128 : i32 to index
      %c0_129 = arith.constant 0 : index
      %c0_130 = arith.constant 0 : index
      %249 = vector.load %arg16[%248, %c0_129, %c0_130] : memref<4x8x1xf32, #tpu.memory_space<vmem>>, vector<1x8x1xf32>
      %250 = vector.shape_cast %249 : vector<1x8x1xf32> to vector<8x1xf32>
      %251 = tpu.reciprocal %250 {approx = true} : vector<8x1xf32> -> vector<8x1xf32>
      %252 = arith.index_cast %c1_i32_128 : i32 to index
      %c0_131 = arith.constant 0 : index
      %c0_132 = arith.constant 0 : index
      %253 = vector.load %arg17[%252, %c0_131, %c0_132] : memref<4x8x8xf32, #tpu.memory_space<vmem>>, vector<1x8x8xf32>
      %254 = vector.shape_cast %253 : vector<1x8x8xf32> to vector<8x8xf32>
      %255 = vector.broadcast %251 : vector<8x1xf32> to vector<8x8xf32>
      %256 = arith.mulf %254, %255 : vector<8x8xf32>
      %257 = arith.index_cast %c1_i32_128 : i32 to index
      %c0_133 = arith.constant 0 : index
      %c0_134 = arith.constant 0 : index
      %258 = vector.load %arg9[%257, %c0_133, %c0_134] : memref<4x8x32xf32, #tpu.memory_space<vmem>>, vector<1x8x32xf32>
      %259 = vector.shape_cast %258 : vector<1x8x32xf32> to vector<8x32xf32>
      %cst_135 = arith.constant dense<0.000000e+00> : vector<8x32xf32>
      %260 = tpu.matmul %256, %259, %cst_135 {dimension_numbers = #tpu.dot_dimension_numbers<[1], [0], [0], [1], [0, 0, 1, 1], [], []>} : vector<8x8xf32>, vector<8x32xf32>, vector<8x32xf32> -> vector<8x32xf32>
      %261 = arith.addf %247, %260 : vector<8x32xf32>
      %c2_i32_136 = arith.constant 2 : i32
      %262 = arith.index_cast %c2_i32_136 : i32 to index
      %c0_137 = arith.constant 0 : index
      %c0_138 = arith.constant 0 : index
      %263 = vector.load %arg16[%262, %c0_137, %c0_138] : memref<4x8x1xf32, #tpu.memory_space<vmem>>, vector<1x8x1xf32>
      %264 = vector.shape_cast %263 : vector<1x8x1xf32> to vector<8x1xf32>
      %265 = tpu.reciprocal %264 {approx = true} : vector<8x1xf32> -> vector<8x1xf32>
      %266 = arith.index_cast %c2_i32_136 : i32 to index
      %c0_139 = arith.constant 0 : index
      %c0_140 = arith.constant 0 : index
      %267 = vector.load %arg17[%266, %c0_139, %c0_140] : memref<4x8x8xf32, #tpu.memory_space<vmem>>, vector<1x8x8xf32>
      %268 = vector.shape_cast %267 : vector<1x8x8xf32> to vector<8x8xf32>
      %269 = vector.broadcast %265 : vector<8x1xf32> to vector<8x8xf32>
      %270 = arith.mulf %268, %269 : vector<8x8xf32>
      %271 = arith.index_cast %c2_i32_136 : i32 to index
      %c0_141 = arith.constant 0 : index
      %c0_142 = arith.constant 0 : index
      %272 = vector.load %arg9[%271, %c0_141, %c0_142] : memref<4x8x32xf32, #tpu.memory_space<vmem>>, vector<1x8x32xf32>
      %273 = vector.shape_cast %272 : vector<1x8x32xf32> to vector<8x32xf32>
      %cst_143 = arith.constant dense<0.000000e+00> : vector<8x32xf32>
      %274 = tpu.matmul %270, %273, %cst_143 {dimension_numbers = #tpu.dot_dimension_numbers<[1], [0], [0], [1], [0, 0, 1, 1], [], []>} : vector<8x8xf32>, vector<8x32xf32>, vector<8x32xf32> -> vector<8x32xf32>
      %275 = arith.addf %261, %274 : vector<8x32xf32>
      %c3_i32_144 = arith.constant 3 : i32
      %276 = arith.index_cast %c3_i32_144 : i32 to index
      %c0_145 = arith.constant 0 : index
      %c0_146 = arith.constant 0 : index
      %277 = vector.load %arg16[%276, %c0_145, %c0_146] : memref<4x8x1xf32, #tpu.memory_space<vmem>>, vector<1x8x1xf32>
      %278 = vector.shape_cast %277 : vector<1x8x1xf32> to vector<8x1xf32>
      %279 = tpu.reciprocal %278 {approx = true} : vector<8x1xf32> -> vector<8x1xf32>
      %280 = arith.index_cast %c3_i32_144 : i32 to index
      %c0_147 = arith.constant 0 : index
      %c0_148 = arith.constant 0 : index
      %281 = vector.load %arg17[%280, %c0_147, %c0_148] : memref<4x8x8xf32, #tpu.memory_space<vmem>>, vector<1x8x8xf32>
      %282 = vector.shape_cast %281 : vector<1x8x8xf32> to vector<8x8xf32>
      %283 = vector.broadcast %279 : vector<8x1xf32> to vector<8x8xf32>
      %284 = arith.mulf %282, %283 : vector<8x8xf32>
      %285 = arith.index_cast %c3_i32_144 : i32 to index
      %c0_149 = arith.constant 0 : index
      %c0_150 = arith.constant 0 : index
      %286 = vector.load %arg9[%285, %c0_149, %c0_150] : memref<4x8x32xf32, #tpu.memory_space<vmem>>, vector<1x8x32xf32>
      %287 = vector.shape_cast %286 : vector<1x8x32xf32> to vector<8x32xf32>
      %cst_151 = arith.constant dense<0.000000e+00> : vector<8x32xf32>
      %288 = tpu.matmul %284, %287, %cst_151 {dimension_numbers = #tpu.dot_dimension_numbers<[1], [0], [0], [1], [0, 0, 1, 1], [], []>} : vector<8x8xf32>, vector<8x32xf32>, vector<8x32xf32> -> vector<8x32xf32>
      %289 = arith.addf %275, %288 : vector<8x32xf32>
      %c4_i32_152 = arith.constant 4 : i32
      %c0_153 = arith.constant 0 : index
      %c0_154 = arith.constant 0 : index
      %290 = vector.load %arg10[%c0_153, %c0_154] : memref<1x32xf32, #tpu.memory_space<vmem>>, vector<1x32xf32>
      %291 = vector.broadcast %290 : vector<1x32xf32> to vector<8x32xf32>
      %292 = arith.addf %289, %291 : vector<8x32xf32>
      %c0_155 = arith.constant 0 : index
      %c0_156 = arith.constant 0 : index
      %c0_157 = arith.constant 0 : index
      %293 = vector.load %arg11[%c0_155, %c0_156, %c0_157] : memref<1x8x32xf32, #tpu.memory_space<vmem>>, vector<1x8x32xf32>
      %294 = vector.shape_cast %293 : vector<1x8x32xf32> to vector<8x32xf32>
      %295 = vector.shape_cast %292 : vector<8x32xf32> to vector<1x8x32xf32>
      tpu.vector_store %arg11[%c0_155, %c0_156, %c0_157], %295 {strides = array<i32>} : memref<1x8x32xf32, #tpu.memory_space<vmem>>, vector<1x8x32xf32>,
    } else {
    }
    return
  }
  func.func @transform_0(%arg0: i32, %arg1: i32, %arg2: i32) -> (i32, i32, i32) {
    %c0_i32 = arith.constant 0 : i32
    %c0_i32_0 = arith.constant 0 : i32
    return %arg0, %arg1, %c0_i32 : i32, i32, i32
  }
  func.func @transform_1(%arg0: i32, %arg1: i32, %arg2: i32) -> (i32, i32, i32) {
    %c0_i32 = arith.constant 0 : i32
    %c0_i32_0 = arith.constant 0 : i32
    return %arg0, %arg2, %c0_i32 : i32, i32, i32
  }
  func.func @transform_2(%arg0: i32, %arg1: i32, %arg2: i32) -> (i32, i32) {
    %c0_i32 = arith.constant 0 : i32
    %c0_i32_0 = arith.constant 0 : i32
    %c0_i32_1 = arith.constant 0 : i32
    return %c0_i32, %c0_i32_0 : i32, i32
  }
  func.func @transform_3(%arg0: i32, %arg1: i32, %arg2: i32) -> (i32, i32) {
    %c0_i32 = arith.constant 0 : i32
    %c0_i32_0 = arith.constant 0 : i32
    %c0_i32_1 = arith.constant 0 : i32
    return %c0_i32, %c0_i32_0 : i32, i32
  }
  func.func @transform_4(%arg0: i32, %arg1: i32, %arg2: i32) -> (i32, i32) {
    %c0_i32 = arith.constant 0 : i32
    %c0_i32_0 = arith.constant 0 : i32
    %c0_i32_1 = arith.constant 0 : i32
    return %c0_i32, %c0_i32_0 : i32, i32
  }
  func.func @transform_5(%arg0: i32, %arg1: i32, %arg2: i32) -> (i32, i32) {
    %c0_i32 = arith.constant 0 : i32
    %c0_i32_0 = arith.constant 0 : i32
    %c0_i32_1 = arith.constant 0 : i32
    return %c0_i32, %c0_i32_0 : i32, i32
  }
  func.func @transform_6(%arg0: i32, %arg1: i32, %arg2: i32) -> (i32, i32, i32) {
    %c0_i32 = arith.constant 0 : i32
    %c0_i32_0 = arith.constant 0 : i32
    %c0_i32_1 = arith.constant 0 : i32
    %c0_i32_2 = arith.constant 0 : i32
    return %c0_i32, %c0_i32_0, %c0_i32_1 : i32, i32, i32
  }
  func.func @transform_7(%arg0: i32, %arg1: i32, %arg2: i32) -> (i32, i32) {
    %c0_i32 = arith.constant 0 : i32
    %c0_i32_0 = arith.constant 0 : i32
    %c0_i32_1 = arith.constant 0 : i32
    return %c0_i32, %c0_i32_0 : i32, i32
  }
  func.func @transform_8(%arg0: i32, %arg1: i32, %arg2: i32) -> (i32, i32, i32) {
    %c0_i32 = arith.constant 0 : i32
    %c0_i32_0 = arith.constant 0 : i32
    return %arg0, %arg1, %c0_i32 : i32, i32, i32
  }
}

</mosaic_0001>

<llo_original>
// kernel: tpu_custom_call.1
$region0: #{tpu_custom_call.1}
  #allocation0 [shape = 'u32[]', space=smem, size = 0x4, offset = 0x4, fixed_abs, tag = 'smem constant byte address 0x4 - core index']
  #allocation1 [shape = 'u32[144,128]{1,0:T(1,128)}', space=vmem, size = 0x12000, scoped, tag = 'internal scratch']
  #allocation2 [shape = 'f32[4,8,8]{2,1,0:T(8,128)}', space=vmem, size = 0x4000, scoped, tag = 'scratch operand']
  #allocation3 [shape = 'f32[4,8,8]{2,1,0:T(8,128)}', space=vmem, size = 0x4000, scoped, tag = 'scratch operand']
  #allocation4 [shape = 'f32[4,8,8]{2,1,0:T(8,128)}', space=vmem, size = 0x4000, scoped, tag = 'scratch operand']
  #allocation5 [shape = 'f32[4,8,1]{2,1,0:T(8,128)}', space=vmem, size = 0x4000, scoped, tag = 'scratch operand']
  #allocation6 [shape = 'f32[4,8,1]{2,1,0:T(8,128)}', space=vmem, size = 0x4000, scoped, tag = 'scratch operand']
  #allocation7 [shape = 'f32[4,8,8]{2,1,0:T(8,128)}', space=vmem, size = 0x4000, scoped, tag = 'scratch operand']
  %s0 = inlined_call_operand.hbm [shape: f32[2,16,32], index: 0, kind: input, shape index: {}]
  %s1 = inlined_call_operand.hbm [shape: f32[2,16,32], index: 1, kind: input, shape index: {}]
  %s2 = inlined_call_operand.hbm [shape: f32[32,32], index: 2, kind: input, shape index: {}]
  %s3 = inlined_call_operand.hbm [shape: f32[32,64], index: 3, kind: input, shape index: {}]
  %s4 = inlined_call_operand.vmem [shape: f32[1,32], index: 4, kind: input, shape index: {}]
  %s5 = inlined_call_operand.vmem [shape: f32[1,64], index: 5, kind: input, shape index: {}]
  %s6 = inlined_call_operand.hbm [shape: f32[4,8,32], index: 6, kind: input, shape index: {}]
  %s7 = inlined_call_operand.vmem [shape: f32[1,32], index: 7, kind: input, shape index: {}]
  %s8 = inlined_call_operand.hbm [shape: f32[2,16,32], index: 8, kind: output, shape index: {}]
  %s9 = sld [smem:[#allocation0]]
  $region93: #{tpu_custom_call.1} parent=0
    _
  %s11 = ssub.s32 1, %s9
  %s12 = scalar_select 0, %s11, %s9
  $region1: #{tpu_custom_call.1} parent=0
    #allocation8 [shape = 'u8[8192]{0}', space=vmem, size = 0x2000, scoped, tag = 'input window, operand 0']
    #allocation9 [shape = 's32[2]{0}', space=sflag, size = 0x8, scoped, tag = 'scoped memory for tpu_custom_call.1']
    #allocation10 [shape = 's32[2]{0}', space=sflag, size = 0x8, scoped, tag = 'scoped memory for tpu_custom_call.1']
    #allocation11 [shape = 'u8[8192]{0}', space=vmem, size = 0x2000, scoped, tag = 'input window, operand 1']
    #allocation12 [shape = 's32[2]{0}', space=sflag, size = 0x8, scoped, tag = 'scoped memory for tpu_custom_call.1']
    #allocation13 [shape = 'u8[16384]{0}', space=vmem, size = 0x4000, scoped, tag = 'input window, operand 2, single buffered']
    #allocation14 [shape = 'u8[16384]{0}', space=vmem, size = 0x4000, scoped, tag = 'input window, operand 3, single buffered']
    #allocation15 [shape = 's32[1]{0}', space=sflag, size = 0x4, scoped, tag = 'scoped memory for tpu_custom_call.1']
    #allocation16 [shape = 'u8[16384]{0}', space=vmem, size = 0x4000, scoped, tag = 'input window, operand 6, single buffered']
    #allocation17 [shape = 'u8[8192]{0}', space=vmem, size = 0x2000, scoped, tag = 'output window, operand 0']
    %13 = vsyncpa [#allocation9], 0
    %s14 = scalar_lea.sflag [#allocation9], 1
    %15 = vsyncpa %s14, 0
    %16 = vsyncpa [#allocation12], 0
    %s17 = scalar_lea.sflag [#allocation12], 1
    %18 = vsyncpa %s17, 0
    %19 = vsyncpa [#allocation15], 0
    %20 = vsyncpa [#allocation10], 0
    %s21 = scalar_lea.sflag [#allocation10], 1
    %22 = vsyncpa %s21, 0
    loop: start=0, step=1, limit=10
    $region2: #{tpu_custom_call.1} parent=1 // loop_pre_header
      _
    $region3: #{tpu_custom_call.1} parent=1 // loop_header
      %s24 = sphi 0, %s28
      %p25 = scmp.ge.s32.totalorder %s24, 10
      %s31 = sphi 0, %s50
      %s32 = sphi 0, %s46
      %s33 = sphi 0, %s42
      %s34 = sphi 0, %s31
      %s35 = sphi 0, %s32
      %s36 = sphi 0, %s33
      %s37 = sphi 0, %s34
      %s38 = sphi 0, %s35
      %s39 = sphi 0, %s36
      %s55 = sphi 0, %s57
      %s58 = sphi 0, %s55
      %s59 = sphi 0, %s58
      %s75 = sphi 0, %s59
      %s83 = sphi 0, %s85
      %s86 = sphi 0, %s83
      %s87 = sphi 0, %s86
      %s103 = sphi 0, %s87
      %s107 = sphi 0, %s107
      %s109 = sphi 0, %s107
      %s110 = sphi 0, %s109
      %s124 = sphi 0, %s110
      %s128 = sphi 0, %s128
      %s130 = sphi 0, %s128
      %s131 = sphi 0, %s130
      %s145 = sphi 0, %s131
      %s149 = sphi 0, %s149
      %s151 = sphi 0, %s149
      %s152 = sphi 0, %s151
      %s166 = sphi 0, %s152
      %s170 = sphi 0, %s170
      %s172 = sphi 0, %s170
      %s173 = sphi 0, %s172
      %s187 = sphi 0, %s173
      %s191 = sphi 0, %s191
      %s193 = sphi 0, %s191
      %s194 = sphi 0, %s193
      %s208 = sphi 0, %s194
      %s212 = sphi 0, %s212
      %s214 = sphi 0, %s212
      %s215 = sphi 0, %s214
      %s229 = sphi 0, %s215
      %s237 = sphi 0, %s239
      %s240 = sphi 0, %s237
      %s241 = sphi 0, %s240
      %s257 = sphi 0, %s241
    $region4: #{tpu_custom_call.1} parent=1 // loop_header_branch
      %27 = sbr.rel (%p25) target = $region8
    $region5: #{tpu_custom_call.1} parent=1 // loop_body
      %s29 = ssub.s32 %s24, 1
      %s30 = ssub.s32 %s24, 2
      %s40 = sadd.s32 1, %s33
      %p41 = scmp.ge.s32.totalorder %s40, 2
      %s42 = scalar_select %p41, 0, %s40
      %s43 = sadd.s32 1, %s32
      %s44 = scalar_select %p41, %s43, %s32
      %p45 = scmp.ge.s32.totalorder %s44, 2
      %s46 = scalar_select %p45, 0, %s44
      %s47 = sadd.s32 1, %s31
      %s48 = scalar_select %p45, %s47, %s31
      %p49 = scmp.ge.s32.totalorder %s48, 2
      %s50 = scalar_select %p49, 0, %s48
      %s51 = ssub.s32 %s31, %s50
      %s52 = ssub.s32 %s32, %s46
      %s53 = sor.u32 %s51, %s52
      %p54 = scmp.eq.s32.totalorder %s53, 0
      %s56 = sadd.s32 %s55, 1
      %s57 = scalar_select %p54, %s55, %s56
      %p60 = pneg %p54
      %p61 = scmp.eq.s32.totalorder %s24, 7
      %p62 = por %p60, %p61
      %p63 = scmp.ne.s32.totalorder %s55, %s58
      %p64 = scmp.eq.s32.totalorder %s24, 0
      %p65 = por %p63, %p64
      %p66 = scmp.ne.s32.totalorder %s55, %s58
      %p67 = scmp.eq.s32.totalorder %s29, 7
      %p68 = por %p66, %p67
      %p69 = scmp.ne.s32.totalorder %s58, %s59
      %p70 = scmp.eq.s32.totalorder %s29, 0
      %p71 = por %p69, %p70
      %p72 = scmp.ne.s32.totalorder %s58, %s59
      %p73 = scmp.eq.s32.totalorder %s30, 7
      %p74 = por %p72, %p73
      %p76 = scmp.ne.s32.totalorder %s59, %s75
      %p77 = scmp.eq.s32.totalorder %s30, 0
      %p78 = por %p76, %p77
      %s79 = ssub.s32 %s31, %s50
      %s80 = ssub.s32 %s33, %s42
      %s81 = sor.u32 %s79, %s80
      %p82 = scmp.eq.s32.totalorder %s81, 0
      %s84 = sadd.s32 %s83, 1
      %s85 = scalar_select %p82, %s83, %s84
      %p88 = pneg %p82
      %p89 = scmp.eq.s32.totalorder %s24, 7
      %p90 = por %p88, %p89
      %p91 = scmp.ne.s32.totalorder %s83, %s86
      %p92 = scmp.eq.s32.totalorder %s24, 0
      %p93 = por %p91, %p92
      %p94 = scmp.ne.s32.totalorder %s83, %s86
      %p95 = scmp.eq.s32.totalorder %s29, 7
      %p96 = por %p94, %p95
      %p97 = scmp.ne.s32.totalorder %s86, %s87
      %p98 = scmp.eq.s32.totalorder %s29, 0
      %p99 = por %p97, %p98
      %p100 = scmp.ne.s32.totalorder %s86, %s87
      %p101 = scmp.eq.s32.totalorder %s30, 7
      %p102 = por %p100, %p101
      %p104 = scmp.ne.s32.totalorder %s87, %s103
      %p105 = scmp.eq.s32.totalorder %s30, 0
      %p106 = por %p104, %p105
      %s108 = sadd.s32 %s107, 1
      %p111 = scmp.eq.s32.totalorder %s24, 7
      %p112 = scmp.ne.s32.totalorder %s107, %s109
      %p113 = scmp.eq.s32.totalorder %s24, 0
      %p114 = por %p112, %p113
      %p115 = scmp.ne.s32.totalorder %s107, %s109
      %p116 = scmp.eq.s32.totalorder %s29, 7
      %p117 = por %p115, %p116
      %p118 = scmp.ne.s32.totalorder %s109, %s110
      %p119 = scmp.eq.s32.totalorder %s29, 0
      %p120 = por %p118, %p119
      %p121 = scmp.ne.s32.totalorder %s109, %s110
      %p122 = scmp.eq.s32.totalorder %s30, 7
      %p123 = por %p121, %p122
      %p125 = scmp.ne.s32.totalorder %s110, %s124
      %p126 = scmp.eq.s32.totalorder %s30, 0
      %p127 = por %p125, %p126
      %s129 = sadd.s32 %s128, 1
      %p132 = scmp.eq.s32.totalorder %s24, 7
      %p133 = scmp.ne.s32.totalorder %s128, %s130
      %p134 = scmp.eq.s32.totalorder %s24, 0
      %p135 = por %p133, %p134
      %p136 = scmp.ne.s32.totalorder %s128, %s130
      %p137 = scmp.eq.s32.totalorder %s29, 7
      %p138 = por %p136, %p137
      %p139 = scmp.ne.s32.totalorder %s130, %s131
      %p140 = scmp.eq.s32.totalorder %s29, 0
      %p141 = por %p139, %p140
      %p142 = scmp.ne.s32.totalorder %s130, %s131
      %p143 = scmp.eq.s32.totalorder %s30, 7
      %p144 = por %p142, %p143
      %p146 = scmp.ne.s32.totalorder %s131, %s145
      %p147 = scmp.eq.s32.totalorder %s30, 0
      %p148 = por %p146, %p147
      %s150 = sadd.s32 %s149, 1
      %p153 = scmp.eq.s32.totalorder %s24, 7
      %p154 = scmp.ne.s32.totalorder %s149, %s151
      %p155 = scmp.eq.s32.totalorder %s24, 0
      %p156 = por %p154, %p155
      %p157 = scmp.ne.s32.totalorder %s149, %s151
      %p158 = scmp.eq.s32.totalorder %s29, 7
      %p159 = por %p157, %p158
      %p160 = scmp.ne.s32.totalorder %s151, %s152
      %p161 = scmp.eq.s32.totalorder %s29, 0
      %p162 = por %p160, %p161
      %p163 = scmp.ne.s32.totalorder %s151, %s152
      %p164 = scmp.eq.s32.totalorder %s30, 7
      %p165 = por %p163, %p164
      %p167 = scmp.ne.s32.totalorder %s152, %s166
      %p168 = scmp.eq.s32.totalorder %s30, 0
      %p169 = por %p167, %p168
      %s171 = sadd.s32 %s170, 1
      %p174 = scmp.eq.s32.totalorder %s24, 7
      %p175 = scmp.ne.s32.totalorder %s170, %s172
      %p176 = scmp.eq.s32.totalorder %s24, 0
      %p177 = por %p175, %p176
      %p178 = scmp.ne.s32.totalorder %s170, %s172
      %p179 = scmp.eq.s32.totalorder %s29, 7
      %p180 = por %p178, %p179
      %p181 = scmp.ne.s32.totalorder %s172, %s173
      %p182 = scmp.eq.s32.totalorder %s29, 0
      %p183 = por %p181, %p182
      %p184 = scmp.ne.s32.totalorder %s172, %s173
      %p185 = scmp.eq.s32.totalorder %s30, 7
      %p186 = por %p184, %p185
      %p188 = scmp.ne.s32.totalorder %s173, %s187
      %p189 = scmp.eq.s32.totalorder %s30, 0
      %p190 = por %p188, %p189
      %s192 = sadd.s32 %s191, 1
      %p195 = scmp.eq.s32.totalorder %s24, 7
      %p196 = scmp.ne.s32.totalorder %s191, %s193
      %p197 = scmp.eq.s32.totalorder %s24, 0
      %p198 = por %p196, %p197
      %p199 = scmp.ne.s32.totalorder %s191, %s193
      %p200 = scmp.eq.s32.totalorder %s29, 7
      %p201 = por %p199, %p200
      %p202 = scmp.ne.s32.totalorder %s193, %s194
      %p203 = scmp.eq.s32.totalorder %s29, 0
      %p204 = por %p202, %p203
      %p205 = scmp.ne.s32.totalorder %s193, %s194
      %p206 = scmp.eq.s32.totalorder %s30, 7
      %p207 = por %p205, %p206
      %p209 = scmp.ne.s32.totalorder %s194, %s208
      %p210 = scmp.eq.s32.totalorder %s30, 0
      %p211 = por %p209, %p210
      %s213 = sadd.s32 %s212, 1
      %p216 = scmp.eq.s32.totalorder %s24, 7
      %p217 = scmp.ne.s32.totalorder %s212, %s214
      %p218 = scmp.eq.s32.totalorder %s24, 0
      %p219 = por %p217, %p218
      %p220 = scmp.ne.s32.totalorder %s212, %s214
      %p221 = scmp.eq.s32.totalorder %s29, 7
      %p222 = por %p220, %p221
      %p223 = scmp.ne.s32.totalorder %s214, %s215
      %p224 = scmp.eq.s32.totalorder %s29, 0
      %p225 = por %p223, %p224
      %p226 = scmp.ne.s32.totalorder %s214, %s215
      %p227 = scmp.eq.s32.totalorder %s30, 7
      %p228 = por %p226, %p227
      %p230 = scmp.ne.s32.totalorder %s215, %s229
      %p231 = scmp.eq.s32.totalorder %s30, 0
      %p232 = por %p230, %p231
      %s233 = ssub.s32 %s31, %s50
      %s234 = ssub.s32 %s32, %s46
      %s235 = sor.u32 %s233, %s234
      %p236 = scmp.eq.s32.totalorder %s235, 0
      %s238 = sadd.s32 %s237, 1
      %s239 = scalar_select %p236, %s237, %s238
      %p242 = pneg %p236
      %p243 = scmp.eq.s32.totalorder %s24, 7
      %p244 = por %p242, %p243
      %p245 = scmp.ne.s32.totalorder %s237, %s240
      %p246 = scmp.eq.s32.totalorder %s24, 0
      %p247 = por %p245, %p246
      %p248 = scmp.ne.s32.totalorder %s237, %s240
      %p249 = scmp.eq.s32.totalorder %s29, 7
      %p250 = por %p248, %p249
      %p251 = scmp.ne.s32.totalorder %s240, %s241
      %p252 = scmp.eq.s32.totalorder %s29, 0
      %p253 = por %p251, %p252
      %p254 = scmp.ne.s32.totalorder %s240, %s241
      %p255 = scmp.eq.s32.totalorder %s30, 7
      %p256 = por %p254, %p255
      %p258 = scmp.ne.s32.totalorder %s241, %s257
      %p259 = scmp.eq.s32.totalorder %s30, 0
      %p260 = por %p258, %p259
      %p261 = scmp.le.s32.totalorder 1, %s24
      %p262 = scmp.lt.s32.totalorder %s24, 9
      %p263 = pnand %p261, %p262
      %p264 = pneg %p263
      // Predicated region
      $region9: #{tpu_custom_call.1} parent=5 // pred_check
        _
      $region10: #{tpu_custom_call.1} parent=5 // pred_check_branch
        %266 = sbr.rel (%p263) target = $region12
      $region11: #{tpu_custom_call.1} parent=5 // pred_region
        %s267 = ssub.s32 %s24, 1
        // Predicated region
        $region13: #{tpu_custom_call.1} parent=11 // pred_check
          %p268 = pneg %p120
        $region14: #{tpu_custom_call.1} parent=11 // pred_check_branch
          %270 = sbr.rel (%p268) target = $region16
        $region15: #{tpu_custom_call.1} parent=11 // pred_region
          %s272 = ssub.s32 512, 512
          %273 = vsyncadd [#allocation12], %s272
          %s274 = sshll.u32 [#allocation13], 4
          %s275 = int_to_ptr.vmem [resolvable:$true] %s274
          %280 = dma.hbm_to_vmem [thread:$0]  %s2, 512, %s275, [#allocation12], 128, 128, 8
        $region16: #{tpu_custom_call.1} parent=11 // pred_fallthru
          _
        // Predicated region
        $region17: #{tpu_custom_call.1} parent=11 // pred_check
          %p281 = pneg %p141
        $region18: #{tpu_custom_call.1} parent=11 // pred_check_branch
          %283 = sbr.rel (%p281) target = $region20
        $region19: #{tpu_custom_call.1} parent=11 // pred_region
          %s285 = ssub.s32 512, 512
          %286 = vsyncadd [#allocation15], %s285
          %s287 = sshll.u32 [#allocation14], 4
          %s288 = int_to_ptr.vmem [resolvable:$true] %s287
          %293 = dma.hbm_to_vmem [thread:$0]  %s3, 512, %s288, [#allocation15], 128, 128, 8
        $region20: #{tpu_custom_call.1} parent=11 // pred_fallthru
          _
        // Predicated region
        $region21: #{tpu_custom_call.1} parent=11 // pred_check
          %p294 = pneg %p162
        $region22: #{tpu_custom_call.1} parent=11 // pred_check_branch
          %296 = sbr.rel (%p294) target = $region24
        $region23: #{tpu_custom_call.1} parent=11 // pred_region
          _
        $region24: #{tpu_custom_call.1} parent=11 // pred_fallthru
          _
        // Predicated region
        $region25: #{tpu_custom_call.1} parent=11 // pred_check
          %p297 = pneg %p183
        $region26: #{tpu_custom_call.1} parent=11 // pred_check_branch
          %299 = sbr.rel (%p297) target = $region28
        $region27: #{tpu_custom_call.1} parent=11 // pred_region
          _
        $region28: #{tpu_custom_call.1} parent=11 // pred_fallthru
          _
        // Predicated region
        $region29: #{tpu_custom_call.1} parent=11 // pred_check
          %p300 = pneg %p204
        $region30: #{tpu_custom_call.1} parent=11 // pred_check_branch
          %302 = sbr.rel (%p300) target = $region32
        $region31: #{tpu_custom_call.1} parent=11 // pred_region
          %s304 = ssub.s32 512, 512
          %305 = vsyncadd [#allocation15], %s304
          %s306 = sshll.u32 [#allocation16], 4
          %s307 = int_to_ptr.vmem [resolvable:$true] %s306
          %312 = dma.hbm_to_vmem [thread:$0]  %s6, 512, %s307, [#allocation15], 128, 128, 8
        $region32: #{tpu_custom_call.1} parent=11 // pred_fallthru
          _
        // Predicated region
        $region33: #{tpu_custom_call.1} parent=11 // pred_check
          %p313 = pneg %p225
        $region34: #{tpu_custom_call.1} parent=11 // pred_check_branch
          %315 = sbr.rel (%p313) target = $region36
        $region35: #{tpu_custom_call.1} parent=11 // pred_region
          _
        $region36: #{tpu_custom_call.1} parent=11 // pred_fallthru
          _
      $region12: #{tpu_custom_call.1} parent=5 // pred_fallthru
        _
      %p316 = scmp.lt.s32.totalorder %s24, 8
      // Predicated region
      $region37: #{tpu_custom_call.1} parent=5 // pred_check
        %p317 = pneg %p316
      $region38: #{tpu_custom_call.1} parent=5 // pred_check_branch
        %319 = sbr.rel (%p317) target = $region40
      $region39: #{tpu_custom_call.1} parent=5 // pred_region
        // Predicated region
        $region41: #{tpu_custom_call.1} parent=39 // pred_check
          %p320 = pneg %p65
        $region42: #{tpu_custom_call.1} parent=39 // pred_check_branch
          %322 = sbr.rel (%p320) target = $region44
        $region43: #{tpu_custom_call.1} parent=39 // pred_region
          %s323 = sand.u32 %s55, 1
          %s324 = scalar_lea.sflag [#allocation9], %s323
          %s325 = sand.u32 %s55, 1
          %s326 = smul.addr %s325, 8
          %s327 = scalar_lea.vmem [#allocation8], %s326
          %s329 = ssub.s32 128, 128
          %330 = vsyncadd %s324, %s329
          %s331 = smul.addr %s31, 2
          %s332 = sadd.s32 %s32, %s331
          %s333 = smul.addr %s332, 128
          %s334 = scalar_lea.hbm %s0, %s333
          %s336 = sshll.u32 %s327, 4
          %s337 = int_to_ptr.vmem [resolvable:$true] %s336
          %339 = dma.hbm_to_vmem [thread:$0]  %s334, 128, %s337, %s324
        $region44: #{tpu_custom_call.1} parent=39 // pred_fallthru
          _
        // Predicated region
        $region45: #{tpu_custom_call.1} parent=39 // pred_check
          %p340 = pneg %p93
        $region46: #{tpu_custom_call.1} parent=39 // pred_check_branch
          %342 = sbr.rel (%p340) target = $region48
        $region47: #{tpu_custom_call.1} parent=39 // pred_region
          %s343 = sand.u32 %s24, 1
          %s344 = scalar_lea.sflag [#allocation12], %s343
          %s345 = sand.u32 %s83, 1
          %s346 = smul.addr %s345, 8
          %s347 = scalar_lea.vmem [#allocation11], %s346
          %s349 = ssub.s32 128, 128
          %350 = vsyncadd %s344, %s349
          %s351 = smul.addr %s31, 2
          %s352 = sadd.s32 %s33, %s351
          %s353 = smul.addr %s352, 128
          %s354 = scalar_lea.hbm %s1, %s353
          %s356 = sshll.u32 %s347, 4
          %s357 = int_to_ptr.vmem [resolvable:$true] %s356
          %359 = dma.hbm_to_vmem [thread:$0]  %s354, 128, %s357, %s344
        $region48: #{tpu_custom_call.1} parent=39 // pred_fallthru
          _
      $region40: #{tpu_custom_call.1} parent=5 // pred_fallthru
        _
      %p360 = scmp.le.s32.totalorder 1, %s24
      %p361 = scmp.lt.s32.totalorder %s24, 9
      %p362 = pnand %p360, %p361
      %p363 = pneg %p362
      // Predicated region
      $region49: #{tpu_custom_call.1} parent=5 // pred_check
        _
      $region50: #{tpu_custom_call.1} parent=5 // pred_check_branch
        %365 = sbr.rel (%p362) target = $region52
      $region51: #{tpu_custom_call.1} parent=5 // pred_region
        %s366 = ssub.s32 %s24, 1
        %s367 = sand.u32 %s58, 1
        %s368 = scalar_lea.sflag [#allocation9], %s367
        %s369 = sand.u32 %s58, 1
        %s370 = smul.addr %s369, 8
        %s371 = scalar_lea.vmem [#allocation8], %s370
        // Predicated region
        $region53: #{tpu_custom_call.1} parent=51 // pred_check
          %p372 = pneg %p71
        $region54: #{tpu_custom_call.1} parent=51 // pred_check_branch
          %374 = sbr.rel (%p372) target = $region56
        $region55: #{tpu_custom_call.1} parent=51 // pred_region
          %375 = dma.done %s368, 128
        $region56: #{tpu_custom_call.1} parent=51 // pred_fallthru
          _
        %s376 = sand.u32 %s29, 1
        %s377 = scalar_lea.sflag [#allocation12], %s376
        %s378 = sand.u32 %s86, 1
        %s379 = smul.addr %s378, 8
        %s380 = scalar_lea.vmem [#allocation11], %s379
        // Predicated region
        $region57: #{tpu_custom_call.1} parent=51 // pred_check
          %p381 = pneg %p99
        $region58: #{tpu_custom_call.1} parent=51 // pred_check_branch
          %383 = sbr.rel (%p381) target = $region60
        $region59: #{tpu_custom_call.1} parent=51 // pred_region
          %384 = dma.done %s377, 128
        $region60: #{tpu_custom_call.1} parent=51 // pred_fallthru
          _
        // Predicated region
        $region61: #{tpu_custom_call.1} parent=51 // pred_check
          %p385 = pneg %p120
        $region62: #{tpu_custom_call.1} parent=51 // pred_check_branch
          %387 = sbr.rel (%p385) target = $region64
        $region63: #{tpu_custom_call.1} parent=51 // pred_region
          %388 = dma.done [#allocation12], 512
        $region64: #{tpu_custom_call.1} parent=51 // pred_fallthru
          _
        // Predicated region
        $region65: #{tpu_custom_call.1} parent=51 // pred_check
          %p389 = pneg %p141
        $region66: #{tpu_custom_call.1} parent=51 // pred_check_branch
          %391 = sbr.rel (%p389) target = $region68
        $region67: #{tpu_custom_call.1} parent=51 // pred_region
          %392 = dma.done [#allocation15], 512
        $region68: #{tpu_custom_call.1} parent=51 // pred_fallthru
          _
        // Predicated region
        $region69: #{tpu_custom_call.1} parent=51 // pred_check
          %p393 = pneg %p204
        $region70: #{tpu_custom_call.1} parent=51 // pred_check_branch
          %395 = sbr.rel (%p393) target = $region72
        $region71: #{tpu_custom_call.1} parent=51 // pred_region
          %396 = dma.done [#allocation15], 512
        $region72: #{tpu_custom_call.1} parent=51 // pred_fallthru
          _
        %s397 = sand.u32 %s58, 1
        %s398 = scalar_lea.sflag [#allocation9], %s397
        %s399 = sand.u32 %s58, 1
        %s400 = smul.addr %s399, 8
        %s401 = scalar_lea.vmem [#allocation8], %s400
        %p402 = pneg %p71
        %p403 = pneg %p68
        %s404 = sand.u32 %s29, 1
        %s405 = scalar_lea.sflag [#allocation12], %s404
        %s406 = sand.u32 %s86, 1
        %s407 = smul.addr %s406, 8
        %s408 = scalar_lea.vmem [#allocation11], %s407
        %p409 = pneg %p99
        %p410 = pneg %p96
        %p411 = pneg %p120
        %p412 = pneg %p117
        %p413 = pneg %p141
        %p414 = pneg %p138
        %p415 = pneg %p162
        %p416 = pneg %p159
        %p417 = pneg %p183
        %p418 = pneg %p180
        %p419 = pneg %p204
        %p420 = pneg %p201
        %p421 = pneg %p225
        %p422 = pneg %p222
        %p423 = pneg %p253
        %p424 = pneg %p250
        %s425 = sand.u32 %s240, 1
        %s426 = scalar_lea.sflag [#allocation10], %s425
        %s427 = sand.u32 %s240, 1
        %s428 = smul.addr %s427, 8
        %s429 = scalar_lea.vmem [#allocation17], %s428
        %p430 = scmp.eq.s32.totalorder %s36, 0
        // Predicated region
        $region73: #{tpu_custom_call.1} parent=51 // pred_check
          %p431 = pneg %p430
        $region74: #{tpu_custom_call.1} parent=51 // pred_check_branch
          %433 = sbr.rel (%p431) target = $region76
        $region75: #{tpu_custom_call.1} parent=51 // pred_region
          %v434 = vld [vmem:[%s371] sm:$0xff]
          %v435 = vld [vmem:[#allocation13] sm:$0xff]
          %v436 = vld [vmem:[#allocation13 + $0x8] sm:$0xff]
          %v437 = vld [vmem:[#allocation13 + $0x10] sm:$0xff]
          %v438 = vld [vmem:[#allocation13 + $0x18] sm:$0xff]
          %v439 = vld [vmem:[%s4] sm:$0x1]
          %v441 = vlaneseq
          %v442 = vshrl.u32 %v441, 7
          %v443 = vsub.s32 0, %v442
          %v444 = vrot.slane %v439, %v443
          %vm446 = vcmask 261120
          %v448 = vsel %vm446, %v434, 0
          %450 = vmatprep.subr.mxu0 0.0
          %451 = vmatpush1.msra.mxu0 0.0
          %452 = vmatprep.subr.mxu0 0.0
          %453 = vmatpush1.msra.mxu0 0.0
          %454 = vmatprep.subr.mxu0 0.0
          %455 = vmatpush1.msra.mxu0 0.0
          %456 = vmatprep.subr.mxu0 0.0
          %457 = vmatpush1.msra.mxu0 0.0
          %458 = vmatprep.subr.mxu0 0.0
          %459 = vmatpush1.msra.mxu0 0.0
          %460 = vmatprep.subr.mxu0 0.0
          %461 = vmatpush1.msra.mxu0 0.0
          %462 = vmatprep.subr.mxu0 0.0
          %463 = vmatpush1.msra.mxu0 0.0
          %464 = vmatprep.subr.mxu0 0.0
          %465 = vmatpush1.msra.mxu0 0.0
          %466 = vmatprep.subr.mxu0 0.0
          %467 = vmatpush1.msra.mxu0 0.0
          %468 = vmatprep.subr.mxu0 0.0
          %469 = vmatpush1.msra.mxu0 0.0
          %470 = vmatprep.subr.mxu0 0.0
          %471 = vmatpush1.msra.mxu0 0.0
          %472 = vmatprep.subr.mxu0 0.0
          %473 = vmatpush1.msra.mxu0 0.0
          %474 = vmatprep.subr.mxu0 0.0
          %475 = vmatpush1.msra.mxu0 %v438
          %476 = vmatprep.subr.mxu0 0.0
          %477 = vmatpush1.msra.mxu0 %v437
          %478 = vmatprep.subr.mxu0 0.0
          %479 = vmatpush1.msra.mxu0 %v436
          %480 = vmatprep.subr.mxu0 0.0
          %481 = vmatpush1.msra.mxu0 %v435
          %482 = vmatprep.subr.mxu0 0.0
          %483 = vmatpush2.msra.mxu0 0.0
          %484 = vmatprep.subr.mxu0 0.0
          %485 = vmatpush2.msra.mxu0 0.0
          %486 = vmatprep.subr.mxu0 0.0
          %487 = vmatpush2.msra.mxu0 0.0
          %488 = vmatprep.subr.mxu0 0.0
          %489 = vmatpush2.msra.mxu0 0.0
          %490 = vmatprep.subr.mxu0 0.0
          %491 = vmatpush2.msra.mxu0 0.0
          %492 = vmatprep.subr.mxu0 0.0
          %493 = vmatpush2.msra.mxu0 0.0
          %494 = vmatprep.subr.mxu0 0.0
          %495 = vmatpush2.msra.mxu0 0.0
          %496 = vmatprep.subr.mxu0 0.0
          %497 = vmatpush2.msra.mxu0 0.0
          %498 = vmatprep.subr.mxu0 0.0
          %499 = vmatpush2.msra.mxu0 0.0
          %500 = vmatprep.subr.mxu0 0.0
          %501 = vmatpush2.msra.mxu0 0.0
          %502 = vmatprep.subr.mxu0 0.0
          %503 = vmatpush2.msra.mxu0 0.0
          %504 = vmatprep.subr.mxu0 0.0
          %505 = vmatpush2.msra.mxu0 0.0
          %506 = vmatprep.subr.mxu0 0.0
          %507 = vmatpush2.msra.mxu0 0.0
          %508 = vmatprep.subr.mxu0 0.0
          %509 = vmatpush2.msra.mxu0 0.0
          %510 = vmatprep.subr.mxu0 0.0
          %511 = vmatpush2.msra.mxu0 0.0
          %512 = vmatprep.subr.mxu0 0.0
          %513 = vmatpush2.msra.mxu0 0.0
          %514 = vmatprep.mubr.f32.mxu0 0.0
          %515 = vmatmul.mubr.f32.gmra.mxu0 %v448
          %v516 = vpop.f32.mrf.mxu0
          %v517 = vadd.f32 %v444, %v516
          %v518 = vpop.f32.mrf.mxu0
          %519 = vdwg.mxu0
          %v520 = vmul.f32 %v517, 0.35355338
          %vm521 = vcmask 64512
          %522 = vst.msk [vmem:[#allocation2] sm:$0xff] %vm521, %v520
          %524 = vrot.lane.b32.xlu0 %v520, 120
          %v525 = vpop.permute.xlu0 %524
          %s527 = scalar_lea.vmem [#allocation2], 8
          %528 = vst.msk [vmem:[%s527] sm:$0xff] %vm521, %v525
          %529 = vrot.lane.b32.xlu0 %v520, 112
          %v530 = vpop.permute.xlu0 %529
          %s532 = scalar_lea.vmem [#allocation2], 16
          %533 = vst.msk [vmem:[%s532] sm:$0xff] %vm521, %v530
          %534 = vrot.lane.b32.xlu0 %v520, 104
          %v535 = vpop.permute.xlu0 %534
          %s537 = scalar_lea.vmem [#allocation2], 24
          %538 = vst.msk [vmem:[%s537] sm:$0xff] %vm521, %v535
          %vm539 = vcmask 7168
          %540 = vst.msk [vmem:[#allocation5] sm:$0xff] %vm539, -inf
          %541 = vst.msk [vmem:[#allocation5 + $0x8] sm:$0xff] %vm539, -inf
          %542 = vst.msk [vmem:[#allocation5 + $0x10] sm:$0xff] %vm539, -inf
          %543 = vst.msk [vmem:[#allocation5 + $0x18] sm:$0xff] %vm539, -inf
          %544 = vst.msk [vmem:[#allocation6] sm:$0xff] %vm539, 0.0
          %545 = vst.msk [vmem:[#allocation6 + $0x8] sm:$0xff] %vm539, 0.0
          %546 = vst.msk [vmem:[#allocation6 + $0x10] sm:$0xff] %vm539, 0.0
          %547 = vst.msk [vmem:[#allocation6 + $0x18] sm:$0xff] %vm539, 0.0
          %548 = vst.msk [vmem:[#allocation7] sm:$0xff] %vm521, 0.0
          %549 = vst.msk [vmem:[#allocation7 + $0x8] sm:$0xff] %vm521, 0.0
          %550 = vst.msk [vmem:[#allocation7 + $0x10] sm:$0xff] %vm521, 0.0
          %551 = vst.msk [vmem:[#allocation7 + $0x18] sm:$0xff] %vm521, 0.0
        $region76: #{tpu_custom_call.1} parent=51 // pred_fallthru
          _
        %v552 = vld [vmem:[%s380] sm:$0xff]
        %v553 = vld [vmem:[#allocation14] sm:$0xff]
        %v554 = vld [vmem:[#allocation14 + $0x8] sm:$0xff]
        %v555 = vld [vmem:[#allocation14 + $0x10] sm:$0xff]
        %v556 = vld [vmem:[#allocation14 + $0x18] sm:$0xff]
        %v557 = vld [vmem:[%s5] sm:$0x1]
        %v559 = vlaneseq
        %v560 = vshrl.u32 %v559, 7
        %v561 = vsub.s32 0, %v560
        %v562 = vrot.slane %v557, %v561
        %vm564 = vcmask 261120
        %v566 = vsel %vm564, %v552, 0
        %568 = vmatprep.subr.mxu0 0.0
        %569 = vmatpush1.msra.mxu0 0.0
        %570 = vmatprep.subr.mxu0 0.0
        %571 = vmatpush1.msra.mxu0 0.0
        %572 = vmatprep.subr.mxu0 0.0
        %573 = vmatpush1.msra.mxu0 0.0
        %574 = vmatprep.subr.mxu0 0.0
        %575 = vmatpush1.msra.mxu0 0.0
        %576 = vmatprep.subr.mxu0 0.0
        %577 = vmatpush1.msra.mxu0 0.0
        %578 = vmatprep.subr.mxu0 0.0
        %579 = vmatpush1.msra.mxu0 0.0
        %580 = vmatprep.subr.mxu0 0.0
        %581 = vmatpush1.msra.mxu0 0.0
        %582 = vmatprep.subr.mxu0 0.0
        %583 = vmatpush1.msra.mxu0 0.0
        %584 = vmatprep.subr.mxu0 0.0
        %585 = vmatpush1.msra.mxu0 0.0
        %586 = vmatprep.subr.mxu0 0.0
        %587 = vmatpush1.msra.mxu0 0.0
        %588 = vmatprep.subr.mxu0 0.0
        %589 = vmatpush1.msra.mxu0 0.0
        %590 = vmatprep.subr.mxu0 0.0
        %591 = vmatpush1.msra.mxu0 0.0
        %592 = vmatprep.subr.mxu0 0.0
        %593 = vmatpush1.msra.mxu0 %v556
        %594 = vmatprep.subr.mxu0 0.0
        %595 = vmatpush1.msra.mxu0 %v555
        %596 = vmatprep.subr.mxu0 0.0
        %597 = vmatpush1.msra.mxu0 %v554
        %598 = vmatprep.subr.mxu0 0.0
        %599 = vmatpush1.msra.mxu0 %v553
        %600 = vmatprep.subr.mxu0 0.0
        %601 = vmatpush2.msra.mxu0 0.0
        %602 = vmatprep.subr.mxu0 0.0
        %603 = vmatpush2.msra.mxu0 0.0
        %604 = vmatprep.subr.mxu0 0.0
        %605 = vmatpush2.msra.mxu0 0.0
        %606 = vmatprep.subr.mxu0 0.0
        %607 = vmatpush2.msra.mxu0 0.0
        %608 = vmatprep.subr.mxu0 0.0
        %609 = vmatpush2.msra.mxu0 0.0
        %610 = vmatprep.subr.mxu0 0.0
        %611 = vmatpush2.msra.mxu0 0.0
        %612 = vmatprep.subr.mxu0 0.0
        %613 = vmatpush2.msra.mxu0 0.0
        %614 = vmatprep.subr.mxu0 0.0
        %615 = vmatpush2.msra.mxu0 0.0
        %616 = vmatprep.subr.mxu0 0.0
        %617 = vmatpush2.msra.mxu0 0.0
        %618 = vmatprep.subr.mxu0 0.0
        %619 = vmatpush2.msra.mxu0 0.0
        %620 = vmatprep.subr.mxu0 0.0
        %621 = vmatpush2.msra.mxu0 0.0
        %622 = vmatprep.subr.mxu0 0.0
        %623 = vmatpush2.msra.mxu0 0.0
        %624 = vmatprep.subr.mxu0 0.0
        %625 = vmatpush2.msra.mxu0 0.0
        %626 = vmatprep.subr.mxu0 0.0
        %627 = vmatpush2.msra.mxu0 0.0
        %628 = vmatprep.subr.mxu0 0.0
        %629 = vmatpush2.msra.mxu0 0.0
        %630 = vmatprep.subr.mxu0 0.0
        %631 = vmatpush2.msra.mxu0 0.0
        %632 = vmatprep.mubr.f32.mxu0 0.0
        %633 = vmatmul.mubr.f32.gmra.mxu0 %v566
        %v634 = vpop.f32.mrf.mxu0
        %v635 = vadd.f32 %v562, %v634
        %v636 = vpop.f32.mrf.mxu0
        %637 = vdwg.mxu0
        %vm638 = vcmask 64512
        %639 = vst.msk [vmem:[#allocation3] sm:$0xff] %vm638, %v635
        %641 = vrot.lane.b32.xlu0 %v635, 96
        %v642 = vpop.permute.xlu0 %641
        %644 = vst.msk [vmem:[#allocation4] sm:$0xff] %vm638, %v642
        %645 = vrot.lane.b32.xlu0 %v635, 120
        %v646 = vpop.permute.xlu0 %645
        %s648 = scalar_lea.vmem [#allocation3], 8
        %649 = vst.msk [vmem:[%s648] sm:$0xff] %vm638, %v646
        %650 = vrot.lane.b32.xlu0 %v635, 88
        %v651 = vpop.permute.xlu0 %650
        %s653 = scalar_lea.vmem [#allocation4], 8
        %654 = vst.msk [vmem:[%s653] sm:$0xff] %vm638, %v651
        %655 = vrot.lane.b32.xlu0 %v635, 112
        %v656 = vpop.permute.xlu0 %655
        %s658 = scalar_lea.vmem [#allocation3], 16
        %659 = vst.msk [vmem:[%s658] sm:$0xff] %vm638, %v656
        %660 = vrot.lane.b32.xlu0 %v635, 80
        %v661 = vpop.permute.xlu0 %660
        %s663 = scalar_lea.vmem [#allocation4], 16
        %664 = vst.msk [vmem:[%s663] sm:$0xff] %vm638, %v661
        %665 = vrot.lane.b32.xlu0 %v635, 104
        %v666 = vpop.permute.xlu0 %665
        %s668 = scalar_lea.vmem [#allocation3], 24
        %669 = vst.msk [vmem:[%s668] sm:$0xff] %vm638, %v666
        %670 = vrot.lane.b32.xlu0 %v635, 72
        %v671 = vpop.permute.xlu0 %670
        %s673 = scalar_lea.vmem [#allocation4], 24
        %674 = vst.msk [vmem:[%s673] sm:$0xff] %vm638, %v671
        %v675 = vld [vmem:[#allocation2] sm:$0xff]
        %v676 = vld [vmem:[#allocation3] sm:$0xff]
        %v677 = vld [vmem:[#allocation4] sm:$0xff]
        %v679 = vsel %vm638, %v675, 0
        %v682 = vsel %vm638, %v676, 0
        %684 = vmatprep.subr.mxu0 0.0
        %685 = vmatpush1.xpose.msra.mxu0 0.0
        %686 = vmatprep.subr.mxu0 0.0
        %687 = vmatpush1.xpose.msra.mxu0 0.0
        %688 = vmatprep.subr.mxu0 0.0
        %689 = vmatpush1.xpose.msra.mxu0 0.0
        %690 = vmatprep.subr.mxu0 0.0
        %691 = vmatpush1.xpose.msra.mxu0 0.0
        %692 = vmatprep.subr.mxu0 0.0
        %693 = vmatpush1.xpose.msra.mxu0 0.0
        %694 = vmatprep.subr.mxu0 0.0
        %695 = vmatpush1.xpose.msra.mxu0 0.0
        %696 = vmatprep.subr.mxu0 0.0
        %697 = vmatpush1.xpose.msra.mxu0 0.0
        %698 = vmatprep.subr.mxu0 0.0
        %699 = vmatpush1.xpose.msra.mxu0 0.0
        %700 = vmatprep.subr.mxu0 0.0
        %701 = vmatpush1.xpose.msra.mxu0 0.0
        %702 = vmatprep.subr.mxu0 0.0
        %703 = vmatpush1.xpose.msra.mxu0 0.0
        %704 = vmatprep.subr.mxu0 0.0
        %705 = vmatpush1.xpose.msra.mxu0 0.0
        %706 = vmatprep.subr.mxu0 0.0
        %707 = vmatpush1.xpose.msra.mxu0 0.0
        %708 = vmatprep.subr.mxu0 0.0
        %709 = vmatpush1.xpose.msra.mxu0 0.0
        %710 = vmatprep.subr.mxu0 0.0
        %711 = vmatpush1.xpose.msra.mxu0 0.0
        %712 = vmatprep.subr.mxu0 0.0
        %713 = vmatpush1.xpose.msra.mxu0 0.0
        %714 = vmatprep.subr.mxu0 0.0
        %715 = vmatpush1.xpose.msra.mxu0 %v682
        %716 = vmatprep.subr.mxu0 0.0
        %717 = vmatpush2.xpose.msra.mxu0 0.0
        %718 = vmatprep.subr.mxu0 0.0
        %719 = vmatpush2.xpose.msra.mxu0 0.0
        %720 = vmatprep.subr.mxu0 0.0
        %721 = vmatpush2.xpose.msra.mxu0 0.0
        %722 = vmatprep.subr.mxu0 0.0
        %723 = vmatpush2.xpose.msra.mxu0 0.0
        %724 = vmatprep.subr.mxu0 0.0
        %725 = vmatpush2.xpose.msra.mxu0 0.0
        %726 = vmatprep.subr.mxu0 0.0
        %727 = vmatpush2.xpose.msra.mxu0 0.0
        %728 = vmatprep.subr.mxu0 0.0
        %729 = vmatpush2.xpose.msra.mxu0 0.0
        %730 = vmatprep.subr.mxu0 0.0
        %731 = vmatpush2.xpose.msra.mxu0 0.0
        %732 = vmatprep.subr.mxu0 0.0
        %733 = vmatpush2.xpose.msra.mxu0 0.0
        %734 = vmatprep.subr.mxu0 0.0
        %735 = vmatpush2.xpose.msra.mxu0 0.0
        %736 = vmatprep.subr.mxu0 0.0
        %737 = vmatpush2.xpose.msra.mxu0 0.0
        %738 = vmatprep.subr.mxu0 0.0
        %739 = vmatpush2.xpose.msra.mxu0 0.0
        %740 = vmatprep.subr.mxu0 0.0
        %741 = vmatpush2.xpose.msra.mxu0 0.0
        %742 = vmatprep.subr.mxu0 0.0
        %743 = vmatpush2.xpose.msra.mxu0 0.0
        %744 = vmatprep.subr.mxu0 0.0
        %745 = vmatpush2.xpose.msra.mxu0 0.0
        %746 = vmatprep.subr.mxu0 0.0
        %747 = vmatpush2.xpose.msra.mxu0 0.0
        %748 = vmatprep.mubr.f32.mxu0 0.0
        %749 = vmatmul.mubr.f32.gmra.mxu0 %v679
        %v750 = vpop.f32.mrf.mxu0
        %v751 = vadd.f32 0.0, %v750
        %v752 = vpop.f32.mrf.mxu0
        %753 = vdwg.mxu0
        %v754 = vld [vmem:[#allocation5] sm:$0xff]
        %v755 = vsel %vm638, %v751, -inf
        %756 = vmax.xlane.f32.xlu0 %v755
        %v757 = vpop.xlane.xlu0 %756
        %v758 = vmax.f32 %v754, %v757
        %v759 = vsub.f32 %v754, %v758
        %v760 = vmul.f32 %v759, 1.442695
        %v761 = vpow.pop %v760
        %763 = vset.pattern.permute.xlu0 0
        %764 = vperm.xlu0 %763, %v758
        %v765 = vpop.permute.xlu0 %764
        %v767 = vsub.f32 %v751, %v765
        %v768 = vmul.f32 %v767, 1.442695
        %v769 = vpow.pop %v768
        %v770 = vld [vmem:[#allocation6] sm:$0xff]
        %v771 = vmul.f32 %v761, %v770
        %v772 = vsel %vm638, %v769, 0.0
        %773 = vadd.xlane.f32.xlu0 %v772
        %v774 = vpop.xlane.xlu0 %773
        %v775 = vadd.f32 %v771, %v774
        %vm776 = vcmask 7168
        %777 = vst.msk [vmem:[#allocation6] sm:$0xff] %vm776, %v775
        %v778 = vld [vmem:[#allocation7] sm:$0xff]
        %780 = vset.pattern.permute.xlu0 0
        %781 = vperm.xlu0 %780, %v761
        %v782 = vpop.permute.xlu0 %781
        %v784 = vmul.f32 %v782, %v778
        %v786 = vsel %vm638, %v769, 0
        %788 = vmatprep.subr.mxu0 0.0
        %789 = vmatpush1.msra.mxu0 0.0
        %790 = vmatprep.subr.mxu0 0.0
        %791 = vmatpush1.msra.mxu0 0.0
        %792 = vmatprep.subr.mxu0 0.0
        %793 = vmatpush1.msra.mxu0 0.0
        %794 = vmatprep.subr.mxu0 0.0
        %795 = vmatpush1.msra.mxu0 0.0
        %796 = vmatprep.subr.mxu0 0.0
        %797 = vmatpush1.msra.mxu0 0.0
        %798 = vmatprep.subr.mxu0 0.0
        %799 = vmatpush1.msra.mxu0 0.0
        %800 = vmatprep.subr.mxu0 0.0
        %801 = vmatpush1.msra.mxu0 0.0
        %802 = vmatprep.subr.mxu0 0.0
        %803 = vmatpush1.msra.mxu0 0.0
        %804 = vmatprep.subr.mxu0 0.0
        %805 = vmatpush1.msra.mxu0 0.0
        %806 = vmatprep.subr.mxu0 0.0
        %807 = vmatpush1.msra.mxu0 0.0
        %808 = vmatprep.subr.mxu0 0.0
        %809 = vmatpush1.msra.mxu0 0.0
        %810 = vmatprep.subr.mxu0 0.0
        %811 = vmatpush1.msra.mxu0 0.0
        %812 = vmatprep.subr.mxu0 0.0
        %813 = vmatpush1.msra.mxu0 0.0
        %814 = vmatprep.subr.mxu0 0.0
        %815 = vmatpush1.msra.mxu0 0.0
        %816 = vmatprep.subr.mxu0 0.0
        %817 = vmatpush1.msra.mxu0 0.0
        %818 = vmatprep.subr.mxu0 0.0
        %819 = vmatpush1.msra.mxu0 %v677
        %820 = vmatprep.subr.mxu0 0.0
        %821 = vmatpush2.msra.mxu0 0.0
        %822 = vmatprep.subr.mxu0 0.0
        %823 = vmatpush2.msra.mxu0 0.0
        %824 = vmatprep.subr.mxu0 0.0
        %825 = vmatpush2.msra.mxu0 0.0
        %826 = vmatprep.subr.mxu0 0.0
        %827 = vmatpush2.msra.mxu0 0.0
        %828 = vmatprep.subr.mxu0 0.0
        %829 = vmatpush2.msra.mxu0 0.0
        %830 = vmatprep.subr.mxu0 0.0
        %831 = vmatpush2.msra.mxu0 0.0
        %832 = vmatprep.subr.mxu0 0.0
        %833 = vmatpush2.msra.mxu0 0.0
        %834 = vmatprep.subr.mxu0 0.0
        %835 = vmatpush2.msra.mxu0 0.0
        %836 = vmatprep.subr.mxu0 0.0
        %837 = vmatpush2.msra.mxu0 0.0
        %838 = vmatprep.subr.mxu0 0.0
        %839 = vmatpush2.msra.mxu0 0.0
        %840 = vmatprep.subr.mxu0 0.0
        %841 = vmatpush2.msra.mxu0 0.0
        %842 = vmatprep.subr.mxu0 0.0
        %843 = vmatpush2.msra.mxu0 0.0
        %844 = vmatprep.subr.mxu0 0.0
        %845 = vmatpush2.msra.mxu0 0.0
        %846 = vmatprep.subr.mxu0 0.0
        %847 = vmatpush2.msra.mxu0 0.0
        %848 = vmatprep.subr.mxu0 0.0
        %849 = vmatpush2.msra.mxu0 0.0
        %850 = vmatprep.subr.mxu0 0.0
        %851 = vmatpush2.msra.mxu0 0.0
        %852 = vmatprep.mubr.f32.mxu0 0.0
        %853 = vmatmul.mubr.f32.gmra.mxu0 %v786
        %v854 = vpop.f32.mrf.mxu0
        %v855 = vadd.f32 0.0, %v854
        %v856 = vpop.f32.mrf.mxu0
        %857 = vdwg.mxu0
        %v858 = vadd.f32 %v784, %v855
        %859 = vst.msk [vmem:[#allocation7] sm:$0xff] %vm638, %v858
        %860 = vst.msk [vmem:[#allocation5] sm:$0xff] %vm776, %v758
        %s861 = scalar_lea.vmem [#allocation2], 8
        %v862 = vld [vmem:[%s861] sm:$0xff]
        %v863 = vld [vmem:[%s648] sm:$0xff]
        %v864 = vld [vmem:[%s653] sm:$0xff]
        %v866 = vsel %vm638, %v862, 0
        %v869 = vsel %vm638, %v863, 0
        %871 = vmatprep.subr.mxu0 0.0
        %872 = vmatpush1.xpose.msra.mxu0 0.0
        %873 = vmatprep.subr.mxu0 0.0
        %874 = vmatpush1.xpose.msra.mxu0 0.0
        %875 = vmatprep.subr.mxu0 0.0
        %876 = vmatpush1.xpose.msra.mxu0 0.0
        %877 = vmatprep.subr.mxu0 0.0
        %878 = vmatpush1.xpose.msra.mxu0 0.0
        %879 = vmatprep.subr.mxu0 0.0
        %880 = vmatpush1.xpose.msra.mxu0 0.0
        %881 = vmatprep.subr.mxu0 0.0
        %882 = vmatpush1.xpose.msra.mxu0 0.0
        %883 = vmatprep.subr.mxu0 0.0
        %884 = vmatpush1.xpose.msra.mxu0 0.0
        %885 = vmatprep.subr.mxu0 0.0
        %886 = vmatpush1.xpose.msra.mxu0 0.0
        %887 = vmatprep.subr.mxu0 0.0
        %888 = vmatpush1.xpose.msra.mxu0 0.0
        %889 = vmatprep.subr.mxu0 0.0
        %890 = vmatpush1.xpose.msra.mxu0 0.0
        %891 = vmatprep.subr.mxu0 0.0
        %892 = vmatpush1.xpose.msra.mxu0 0.0
        %893 = vmatprep.subr.mxu0 0.0
        %894 = vmatpush1.xpose.msra.mxu0 0.0
        %895 = vmatprep.subr.mxu0 0.0
        %896 = vmatpush1.xpose.msra.mxu0 0.0
        %897 = vmatprep.subr.mxu0 0.0
        %898 = vmatpush1.xpose.msra.mxu0 0.0
        %899 = vmatprep.subr.mxu0 0.0
        %900 = vmatpush1.xpose.msra.mxu0 0.0
        %901 = vmatprep.subr.mxu0 0.0
        %902 = vmatpush1.xpose.msra.mxu0 %v869
        %903 = vmatprep.subr.mxu0 0.0
        %904 = vmatpush2.xpose.msra.mxu0 0.0
        %905 = vmatprep.subr.mxu0 0.0
        %906 = vmatpush2.xpose.msra.mxu0 0.0
        %907 = vmatprep.subr.mxu0 0.0
        %908 = vmatpush2.xpose.msra.mxu0 0.0
        %909 = vmatprep.subr.mxu0 0.0
        %910 = vmatpush2.xpose.msra.mxu0 0.0
        %911 = vmatprep.subr.mxu0 0.0
        %912 = vmatpush2.xpose.msra.mxu0 0.0
        %913 = vmatprep.subr.mxu0 0.0
        %914 = vmatpush2.xpose.msra.mxu0 0.0
        %915 = vmatprep.subr.mxu0 0.0
        %916 = vmatpush2.xpose.msra.mxu0 0.0
        %917 = vmatprep.subr.mxu0 0.0
        %918 = vmatpush2.xpose.msra.mxu0 0.0
        %919 = vmatprep.subr.mxu0 0.0
        %920 = vmatpush2.xpose.msra.mxu0 0.0
        %921 = vmatprep.subr.mxu0 0.0
        %922 = vmatpush2.xpose.msra.mxu0 0.0
        %923 = vmatprep.subr.mxu0 0.0
        %924 = vmatpush2.xpose.msra.mxu0 0.0
        %925 = vmatprep.subr.mxu0 0.0
        %926 = vmatpush2.xpose.msra.mxu0 0.0
        %927 = vmatprep.subr.mxu0 0.0
        %928 = vmatpush2.xpose.msra.mxu0 0.0
        %929 = vmatprep.subr.mxu0 0.0
        %930 = vmatpush2.xpose.msra.mxu0 0.0
        %931 = vmatprep.subr.mxu0 0.0
        %932 = vmatpush2.xpose.msra.mxu0 0.0
        %933 = vmatprep.subr.mxu0 0.0
        %934 = vmatpush2.xpose.msra.mxu0 0.0
        %935 = vmatprep.mubr.f32.mxu0 0.0
        %936 = vmatmul.mubr.f32.gmra.mxu0 %v866
        %v937 = vpop.f32.mrf.mxu0
        %v938 = vadd.f32 0.0, %v937
        %v939 = vpop.f32.mrf.mxu0
        %940 = vdwg.mxu0
        %s941 = scalar_lea.vmem [#allocation5], 8
        %v942 = vld [vmem:[%s941] sm:$0xff]
        %v943 = vsel %vm638, %v938, -inf
        %944 = vmax.xlane.f32.xlu0 %v943
        %v945 = vpop.xlane.xlu0 %944
        %v946 = vmax.f32 %v942, %v945
        %v947 = vsub.f32 %v942, %v946
        %v948 = vmul.f32 %v947, 1.442695
        %v949 = vpow.pop %v948
        %951 = vset.pattern.permute.xlu0 0
        %952 = vperm.xlu0 %951, %v946
        %v953 = vpop.permute.xlu0 %952
        %v955 = vsub.f32 %v938, %v953
        %v956 = vmul.f32 %v955, 1.442695
        %v957 = vpow.pop %v956
        %s958 = scalar_lea.vmem [#allocation6], 8
        %v959 = vld [vmem:[%s958] sm:$0xff]
        %v960 = vmul.f32 %v949, %v959
        %v961 = vsel %vm638, %v957, 0.0
        %962 = vadd.xlane.f32.xlu0 %v961
        %v963 = vpop.xlane.xlu0 %962
        %v964 = vadd.f32 %v960, %v963
        %965 = vst.msk [vmem:[%s958] sm:$0xff] %vm776, %v964
        %s966 = scalar_lea.vmem [#allocation7], 8
        %v967 = vld [vmem:[%s966] sm:$0xff]
        %969 = vset.pattern.permute.xlu0 0
        %970 = vperm.xlu0 %969, %v949
        %v971 = vpop.permute.xlu0 %970
        %v973 = vmul.f32 %v971, %v967
        %v975 = vsel %vm638, %v957, 0
        %977 = vmatprep.subr.mxu0 0.0
        %978 = vmatpush1.msra.mxu0 0.0
        %979 = vmatprep.subr.mxu0 0.0
        %980 = vmatpush1.msra.mxu0 0.0
        %981 = vmatprep.subr.mxu0 0.0
        %982 = vmatpush1.msra.mxu0 0.0
        %983 = vmatprep.subr.mxu0 0.0
        %984 = vmatpush1.msra.mxu0 0.0
        %985 = vmatprep.subr.mxu0 0.0
        %986 = vmatpush1.msra.mxu0 0.0
        %987 = vmatprep.subr.mxu0 0.0
        %988 = vmatpush1.msra.mxu0 0.0
        %989 = vmatprep.subr.mxu0 0.0
        %990 = vmatpush1.msra.mxu0 0.0
        %991 = vmatprep.subr.mxu0 0.0
        %992 = vmatpush1.msra.mxu0 0.0
        %993 = vmatprep.subr.mxu0 0.0
        %994 = vmatpush1.msra.mxu0 0.0
        %995 = vmatprep.subr.mxu0 0.0
        %996 = vmatpush1.msra.mxu0 0.0
        %997 = vmatprep.subr.mxu0 0.0
        %998 = vmatpush1.msra.mxu0 0.0
        %999 = vmatprep.subr.mxu0 0.0
        %1000 = vmatpush1.msra.mxu0 0.0
        %1001 = vmatprep.subr.mxu0 0.0
        %1002 = vmatpush1.msra.mxu0 0.0
        %1003 = vmatprep.subr.mxu0 0.0
        %1004 = vmatpush1.msra.mxu0 0.0
        %1005 = vmatprep.subr.mxu0 0.0
        %1006 = vmatpush1.msra.mxu0 0.0
        %1007 = vmatprep.subr.mxu0 0.0
        %1008 = vmatpush1.msra.mxu0 %v864
        %1009 = vmatprep.subr.mxu0 0.0
        %1010 = vmatpush2.msra.mxu0 0.0
        %1011 = vmatprep.subr.mxu0 0.0
        %1012 = vmatpush2.msra.mxu0 0.0
        %1013 = vmatprep.subr.mxu0 0.0
        %1014 = vmatpush2.msra.mxu0 0.0
        %1015 = vmatprep.subr.mxu0 0.0
        %1016 = vmatpush2.msra.mxu0 0.0
        %1017 = vmatprep.subr.mxu0 0.0
        %1018 = vmatpush2.msra.mxu0 0.0
        %1019 = vmatprep.subr.mxu0 0.0
        %1020 = vmatpush2.msra.mxu0 0.0
        %1021 = vmatprep.subr.mxu0 0.0
        %1022 = vmatpush2.msra.mxu0 0.0
        %1023 = vmatprep.subr.mxu0 0.0
        %1024 = vmatpush2.msra.mxu0 0.0
        %1025 = vmatprep.subr.mxu0 0.0
        %1026 = vmatpush2.msra.mxu0 0.0
        %1027 = vmatprep.subr.mxu0 0.0
        %1028 = vmatpush2.msra.mxu0 0.0
        %1029 = vmatprep.subr.mxu0 0.0
        %1030 = vmatpush2.msra.mxu0 0.0
        %1031 = vmatprep.subr.mxu0 0.0
        %1032 = vmatpush2.msra.mxu0 0.0
        %1033 = vmatprep.subr.mxu0 0.0
        %1034 = vmatpush2.msra.mxu0 0.0
        %1035 = vmatprep.subr.mxu0 0.0
        %1036 = vmatpush2.msra.mxu0 0.0
        %1037 = vmatprep.subr.mxu0 0.0
        %1038 = vmatpush2.msra.mxu0 0.0
        %1039 = vmatprep.subr.mxu0 0.0
        %1040 = vmatpush2.msra.mxu0 0.0
        %1041 = vmatprep.mubr.f32.mxu0 0.0
        %1042 = vmatmul.mubr.f32.gmra.mxu0 %v975
        %v1043 = vpop.f32.mrf.mxu0
        %v1044 = vadd.f32 0.0, %v1043
        %v1045 = vpop.f32.mrf.mxu0
        %1046 = vdwg.mxu0
        %v1047 = vadd.f32 %v973, %v1044
        %1048 = vst.msk [vmem:[%s966] sm:$0xff] %vm638, %v1047
        %1049 = vst.msk [vmem:[%s941] sm:$0xff] %vm776, %v946
        %s1050 = scalar_lea.vmem [#allocation2], 16
        %v1051 = vld [vmem:[%s1050] sm:$0xff]
        %v1052 = vld [vmem:[%s658] sm:$0xff]
        %v1053 = vld [vmem:[%s663] sm:$0xff]
        %v1055 = vsel %vm638, %v1051, 0
        %v1058 = vsel %vm638, %v1052, 0
        %1060 = vmatprep.subr.mxu0 0.0
        %1061 = vmatpush1.xpose.msra.mxu0 0.0
        %1062 = vmatprep.subr.mxu0 0.0
        %1063 = vmatpush1.xpose.msra.mxu0 0.0
        %1064 = vmatprep.subr.mxu0 0.0
        %1065 = vmatpush1.xpose.msra.mxu0 0.0
        %1066 = vmatprep.subr.mxu0 0.0
        %1067 = vmatpush1.xpose.msra.mxu0 0.0
        %1068 = vmatprep.subr.mxu0 0.0
        %1069 = vmatpush1.xpose.msra.mxu0 0.0
        %1070 = vmatprep.subr.mxu0 0.0
        %1071 = vmatpush1.xpose.msra.mxu0 0.0
        %1072 = vmatprep.subr.mxu0 0.0
        %1073 = vmatpush1.xpose.msra.mxu0 0.0
        %1074 = vmatprep.subr.mxu0 0.0
        %1075 = vmatpush1.xpose.msra.mxu0 0.0
        %1076 = vmatprep.subr.mxu0 0.0
        %1077 = vmatpush1.xpose.msra.mxu0 0.0
        %1078 = vmatprep.subr.mxu0 0.0
        %1079 = vmatpush1.xpose.msra.mxu0 0.0
        %1080 = vmatprep.subr.mxu0 0.0
        %1081 = vmatpush1.xpose.msra.mxu0 0.0
        %1082 = vmatprep.subr.mxu0 0.0
        %1083 = vmatpush1.xpose.msra.mxu0 0.0
        %1084 = vmatprep.subr.mxu0 0.0
        %1085 = vmatpush1.xpose.msra.mxu0 0.0
        %1086 = vmatprep.subr.mxu0 0.0
        %1087 = vmatpush1.xpose.msra.mxu0 0.0
        %1088 = vmatprep.subr.mxu0 0.0
        %1089 = vmatpush1.xpose.msra.mxu0 0.0
        %1090 = vmatprep.subr.mxu0 0.0
        %1091 = vmatpush1.xpose.msra.mxu0 %v1058
        %1092 = vmatprep.subr.mxu0 0.0
        %1093 = vmatpush2.xpose.msra.mxu0 0.0
        %1094 = vmatprep.subr.mxu0 0.0
        %1095 = vmatpush2.xpose.msra.mxu0 0.0
        %1096 = vmatprep.subr.mxu0 0.0
        %1097 = vmatpush2.xpose.msra.mxu0 0.0
        %1098 = vmatprep.subr.mxu0 0.0
        %1099 = vmatpush2.xpose.msra.mxu0 0.0
        %1100 = vmatprep.subr.mxu0 0.0
        %1101 = vmatpush2.xpose.msra.mxu0 0.0
        %1102 = vmatprep.subr.mxu0 0.0
        %1103 = vmatpush2.xpose.msra.mxu0 0.0
        %1104 = vmatprep.subr.mxu0 0.0
        %1105 = vmatpush2.xpose.msra.mxu0 0.0
        %1106 = vmatprep.subr.mxu0 0.0
        %1107 = vmatpush2.xpose.msra.mxu0 0.0
        %1108 = vmatprep.subr.mxu0 0.0
        %1109 = vmatpush2.xpose.msra.mxu0 0.0
        %1110 = vmatprep.subr.mxu0 0.0
        %1111 = vmatpush2.xpose.msra.mxu0 0.0
        %1112 = vmatprep.subr.mxu0 0.0
        %1113 = vmatpush2.xpose.msra.mxu0 0.0
        %1114 = vmatprep.subr.mxu0 0.0
        %1115 = vmatpush2.xpose.msra.mxu0 0.0
        %1116 = vmatprep.subr.mxu0 0.0
        %1117 = vmatpush2.xpose.msra.mxu0 0.0
        %1118 = vmatprep.subr.mxu0 0.0
        %1119 = vmatpush2.xpose.msra.mxu0 0.0
        %1120 = vmatprep.subr.mxu0 0.0
        %1121 = vmatpush2.xpose.msra.mxu0 0.0
        %1122 = vmatprep.subr.mxu0 0.0
        %1123 = vmatpush2.xpose.msra.mxu0 0.0
        %1124 = vmatprep.mubr.f32.mxu0 0.0
        %1125 = vmatmul.mubr.f32.gmra.mxu0 %v1055
        %v1126 = vpop.f32.mrf.mxu0
        %v1127 = vadd.f32 0.0, %v1126
        %v1128 = vpop.f32.mrf.mxu0
        %1129 = vdwg.mxu0
        %s1130 = scalar_lea.vmem [#allocation5], 16
        %v1131 = vld [vmem:[%s1130] sm:$0xff]
        %v1132 = vsel %vm638, %v1127, -inf
        %1133 = vmax.xlane.f32.xlu0 %v1132
        %v1134 = vpop.xlane.xlu0 %1133
        %v1135 = vmax.f32 %v1131, %v1134
        %v1136 = vsub.f32 %v1131, %v1135
        %v1137 = vmul.f32 %v1136, 1.442695
        %v1138 = vpow.pop %v1137
        %1140 = vset.pattern.permute.xlu0 0
        %1141 = vperm.xlu0 %1140, %v1135
        %v1142 = vpop.permute.xlu0 %1141
        %v1144 = vsub.f32 %v1127, %v1142
        %v1145 = vmul.f32 %v1144, 1.442695
        %v1146 = vpow.pop %v1145
        %s1147 = scalar_lea.vmem [#allocation6], 16
        %v1148 = vld [vmem:[%s1147] sm:$0xff]
        %v1149 = vmul.f32 %v1138, %v1148
        %v1150 = vsel %vm638, %v1146, 0.0
        %1151 = vadd.xlane.f32.xlu0 %v1150
        %v1152 = vpop.xlane.xlu0 %1151
        %v1153 = vadd.f32 %v1149, %v1152
        %1154 = vst.msk [vmem:[%s1147] sm:$0xff] %vm776, %v1153
        %s1155 = scalar_lea.vmem [#allocation7], 16
        %v1156 = vld [vmem:[%s1155] sm:$0xff]
        %1158 = vset.pattern.permute.xlu0 0
        %1159 = vperm.xlu0 %1158, %v1138
        %v1160 = vpop.permute.xlu0 %1159
        %v1162 = vmul.f32 %v1160, %v1156
        %v1164 = vsel %vm638, %v1146, 0
        %1166 = vmatprep.subr.mxu0 0.0
        %1167 = vmatpush1.msra.mxu0 0.0
        %1168 = vmatprep.subr.mxu0 0.0
        %1169 = vmatpush1.msra.mxu0 0.0
        %1170 = vmatprep.subr.mxu0 0.0
        %1171 = vmatpush1.msra.mxu0 0.0
        %1172 = vmatprep.subr.mxu0 0.0
        %1173 = vmatpush1.msra.mxu0 0.0
        %1174 = vmatprep.subr.mxu0 0.0
        %1175 = vmatpush1.msra.mxu0 0.0
        %1176 = vmatprep.subr.mxu0 0.0
        %1177 = vmatpush1.msra.mxu0 0.0
        %1178 = vmatprep.subr.mxu0 0.0
        %1179 = vmatpush1.msra.mxu0 0.0
        %1180 = vmatprep.subr.mxu0 0.0
        %1181 = vmatpush1.msra.mxu0 0.0
        %1182 = vmatprep.subr.mxu0 0.0
        %1183 = vmatpush1.msra.mxu0 0.0
        %1184 = vmatprep.subr.mxu0 0.0
        %1185 = vmatpush1.msra.mxu0 0.0
        %1186 = vmatprep.subr.mxu0 0.0
        %1187 = vmatpush1.msra.mxu0 0.0
        %1188 = vmatprep.subr.mxu0 0.0
        %1189 = vmatpush1.msra.mxu0 0.0
        %1190 = vmatprep.subr.mxu0 0.0
        %1191 = vmatpush1.msra.mxu0 0.0
        %1192 = vmatprep.subr.mxu0 0.0
        %1193 = vmatpush1.msra.mxu0 0.0
        %1194 = vmatprep.subr.mxu0 0.0
        %1195 = vmatpush1.msra.mxu0 0.0
        %1196 = vmatprep.subr.mxu0 0.0
        %1197 = vmatpush1.msra.mxu0 %v1053
        %1198 = vmatprep.subr.mxu0 0.0
        %1199 = vmatpush2.msra.mxu0 0.0
        %1200 = vmatprep.subr.mxu0 0.0
        %1201 = vmatpush2.msra.mxu0 0.0
        %1202 = vmatprep.subr.mxu0 0.0
        %1203 = vmatpush2.msra.mxu0 0.0
        %1204 = vmatprep.subr.mxu0 0.0
        %1205 = vmatpush2.msra.mxu0 0.0
        %1206 = vmatprep.subr.mxu0 0.0
        %1207 = vmatpush2.msra.mxu0 0.0
        %1208 = vmatprep.subr.mxu0 0.0
        %1209 = vmatpush2.msra.mxu0 0.0
        %1210 = vmatprep.subr.mxu0 0.0
        %1211 = vmatpush2.msra.mxu0 0.0
        %1212 = vmatprep.subr.mxu0 0.0
        %1213 = vmatpush2.msra.mxu0 0.0
        %1214 = vmatprep.subr.mxu0 0.0
        %1215 = vmatpush2.msra.mxu0 0.0
        %1216 = vmatprep.subr.mxu0 0.0
        %1217 = vmatpush2.msra.mxu0 0.0
        %1218 = vmatprep.subr.mxu0 0.0
        %1219 = vmatpush2.msra.mxu0 0.0
        %1220 = vmatprep.subr.mxu0 0.0
        %1221 = vmatpush2.msra.mxu0 0.0
        %1222 = vmatprep.subr.mxu0 0.0
        %1223 = vmatpush2.msra.mxu0 0.0
        %1224 = vmatprep.subr.mxu0 0.0
        %1225 = vmatpush2.msra.mxu0 0.0
        %1226 = vmatprep.subr.mxu0 0.0
        %1227 = vmatpush2.msra.mxu0 0.0
        %1228 = vmatprep.subr.mxu0 0.0
        %1229 = vmatpush2.msra.mxu0 0.0
        %1230 = vmatprep.mubr.f32.mxu0 0.0
        %1231 = vmatmul.mubr.f32.gmra.mxu0 %v1164
        %v1232 = vpop.f32.mrf.mxu0
        %v1233 = vadd.f32 0.0, %v1232
        %v1234 = vpop.f32.mrf.mxu0
        %1235 = vdwg.mxu0
        %v1236 = vadd.f32 %v1162, %v1233
        %1237 = vst.msk [vmem:[%s1155] sm:$0xff] %vm638, %v1236
        %1238 = vst.msk [vmem:[%s1130] sm:$0xff] %vm776, %v1135
        %s1239 = scalar_lea.vmem [#allocation2], 24
        %v1240 = vld [vmem:[%s1239] sm:$0xff]
        %v1241 = vld [vmem:[%s668] sm:$0xff]
        %v1242 = vld [vmem:[%s673] sm:$0xff]
        %v1244 = vsel %vm638, %v1240, 0
        %v1247 = vsel %vm638, %v1241, 0
        %1249 = vmatprep.subr.mxu0 0.0
        %1250 = vmatpush1.xpose.msra.mxu0 0.0
        %1251 = vmatprep.subr.mxu0 0.0
        %1252 = vmatpush1.xpose.msra.mxu0 0.0
        %1253 = vmatprep.subr.mxu0 0.0
        %1254 = vmatpush1.xpose.msra.mxu0 0.0
        %1255 = vmatprep.subr.mxu0 0.0
        %1256 = vmatpush1.xpose.msra.mxu0 0.0
        %1257 = vmatprep.subr.mxu0 0.0
        %1258 = vmatpush1.xpose.msra.mxu0 0.0
        %1259 = vmatprep.subr.mxu0 0.0
        %1260 = vmatpush1.xpose.msra.mxu0 0.0
        %1261 = vmatprep.subr.mxu0 0.0
        %1262 = vmatpush1.xpose.msra.mxu0 0.0
        %1263 = vmatprep.subr.mxu0 0.0
        %1264 = vmatpush1.xpose.msra.mxu0 0.0
        %1265 = vmatprep.subr.mxu0 0.0
        %1266 = vmatpush1.xpose.msra.mxu0 0.0
        %1267 = vmatprep.subr.mxu0 0.0
        %1268 = vmatpush1.xpose.msra.mxu0 0.0
        %1269 = vmatprep.subr.mxu0 0.0
        %1270 = vmatpush1.xpose.msra.mxu0 0.0
        %1271 = vmatprep.subr.mxu0 0.0
        %1272 = vmatpush1.xpose.msra.mxu0 0.0
        %1273 = vmatprep.subr.mxu0 0.0
        %1274 = vmatpush1.xpose.msra.mxu0 0.0
        %1275 = vmatprep.subr.mxu0 0.0
        %1276 = vmatpush1.xpose.msra.mxu0 0.0
        %1277 = vmatprep.subr.mxu0 0.0
        %1278 = vmatpush1.xpose.msra.mxu0 0.0
        %1279 = vmatprep.subr.mxu0 0.0
        %1280 = vmatpush1.xpose.msra.mxu0 %v1247
        %1281 = vmatprep.subr.mxu0 0.0
        %1282 = vmatpush2.xpose.msra.mxu0 0.0
        %1283 = vmatprep.subr.mxu0 0.0
        %1284 = vmatpush2.xpose.msra.mxu0 0.0
        %1285 = vmatprep.subr.mxu0 0.0
        %1286 = vmatpush2.xpose.msra.mxu0 0.0
        %1287 = vmatprep.subr.mxu0 0.0
        %1288 = vmatpush2.xpose.msra.mxu0 0.0
        %1289 = vmatprep.subr.mxu0 0.0
        %1290 = vmatpush2.xpose.msra.mxu0 0.0
        %1291 = vmatprep.subr.mxu0 0.0
        %1292 = vmatpush2.xpose.msra.mxu0 0.0
        %1293 = vmatprep.subr.mxu0 0.0
        %1294 = vmatpush2.xpose.msra.mxu0 0.0
        %1295 = vmatprep.subr.mxu0 0.0
        %1296 = vmatpush2.xpose.msra.mxu0 0.0
        %1297 = vmatprep.subr.mxu0 0.0
        %1298 = vmatpush2.xpose.msra.mxu0 0.0
        %1299 = vmatprep.subr.mxu0 0.0
        %1300 = vmatpush2.xpose.msra.mxu0 0.0
        %1301 = vmatprep.subr.mxu0 0.0
        %1302 = vmatpush2.xpose.msra.mxu0 0.0
        %1303 = vmatprep.subr.mxu0 0.0
        %1304 = vmatpush2.xpose.msra.mxu0 0.0
        %1305 = vmatprep.subr.mxu0 0.0
        %1306 = vmatpush2.xpose.msra.mxu0 0.0
        %1307 = vmatprep.subr.mxu0 0.0
        %1308 = vmatpush2.xpose.msra.mxu0 0.0
        %1309 = vmatprep.subr.mxu0 0.0
        %1310 = vmatpush2.xpose.msra.mxu0 0.0
        %1311 = vmatprep.subr.mxu0 0.0
        %1312 = vmatpush2.xpose.msra.mxu0 0.0
        %1313 = vmatprep.mubr.f32.mxu0 0.0
        %1314 = vmatmul.mubr.f32.gmra.mxu0 %v1244
        %v1315 = vpop.f32.mrf.mxu0
        %v1316 = vadd.f32 0.0, %v1315
        %v1317 = vpop.f32.mrf.mxu0
        %1318 = vdwg.mxu0
        %s1319 = scalar_lea.vmem [#allocation5], 24
        %v1320 = vld [vmem:[%s1319] sm:$0xff]
        %v1321 = vsel %vm638, %v1316, -inf
        %1322 = vmax.xlane.f32.xlu0 %v1321
        %v1323 = vpop.xlane.xlu0 %1322
        %v1324 = vmax.f32 %v1320, %v1323
        %v1325 = vsub.f32 %v1320, %v1324
        %v1326 = vmul.f32 %v1325, 1.442695
        %v1327 = vpow.pop %v1326
        %1329 = vset.pattern.permute.xlu0 0
        %1330 = vperm.xlu0 %1329, %v1324
        %v1331 = vpop.permute.xlu0 %1330
        %v1333 = vsub.f32 %v1316, %v1331
        %v1334 = vmul.f32 %v1333, 1.442695
        %v1335 = vpow.pop %v1334
        %s1336 = scalar_lea.vmem [#allocation6], 24
        %v1337 = vld [vmem:[%s1336] sm:$0xff]
        %v1338 = vmul.f32 %v1327, %v1337
        %v1339 = vsel %vm638, %v1335, 0.0
        %1340 = vadd.xlane.f32.xlu0 %v1339
        %v1341 = vpop.xlane.xlu0 %1340
        %v1342 = vadd.f32 %v1338, %v1341
        %1343 = vst.msk [vmem:[%s1336] sm:$0xff] %vm776, %v1342
        %s1344 = scalar_lea.vmem [#allocation7], 24
        %v1345 = vld [vmem:[%s1344] sm:$0xff]
        %1347 = vset.pattern.permute.xlu0 0
        %1348 = vperm.xlu0 %1347, %v1327
        %v1349 = vpop.permute.xlu0 %1348
        %v1351 = vmul.f32 %v1349, %v1345
        %v1353 = vsel %vm638, %v1335, 0
        %1355 = vmatprep.subr.mxu0 0.0
        %1356 = vmatpush1.msra.mxu0 0.0
        %1357 = vmatprep.subr.mxu0 0.0
        %1358 = vmatpush1.msra.mxu0 0.0
        %1359 = vmatprep.subr.mxu0 0.0
        %1360 = vmatpush1.msra.mxu0 0.0
        %1361 = vmatprep.subr.mxu0 0.0
        %1362 = vmatpush1.msra.mxu0 0.0
        %1363 = vmatprep.subr.mxu0 0.0
        %1364 = vmatpush1.msra.mxu0 0.0
        %1365 = vmatprep.subr.mxu0 0.0
        %1366 = vmatpush1.msra.mxu0 0.0
        %1367 = vmatprep.subr.mxu0 0.0
        %1368 = vmatpush1.msra.mxu0 0.0
        %1369 = vmatprep.subr.mxu0 0.0
        %1370 = vmatpush1.msra.mxu0 0.0
        %1371 = vmatprep.subr.mxu0 0.0
        %1372 = vmatpush1.msra.mxu0 0.0
        %1373 = vmatprep.subr.mxu0 0.0
        %1374 = vmatpush1.msra.mxu0 0.0
        %1375 = vmatprep.subr.mxu0 0.0
        %1376 = vmatpush1.msra.mxu0 0.0
        %1377 = vmatprep.subr.mxu0 0.0
        %1378 = vmatpush1.msra.mxu0 0.0
        %1379 = vmatprep.subr.mxu0 0.0
        %1380 = vmatpush1.msra.mxu0 0.0
        %1381 = vmatprep.subr.mxu0 0.0
        %1382 = vmatpush1.msra.mxu0 0.0
        %1383 = vmatprep.subr.mxu0 0.0
        %1384 = vmatpush1.msra.mxu0 0.0
        %1385 = vmatprep.subr.mxu0 0.0
        %1386 = vmatpush1.msra.mxu0 %v1242
        %1387 = vmatprep.subr.mxu0 0.0
        %1388 = vmatpush2.msra.mxu0 0.0
        %1389 = vmatprep.subr.mxu0 0.0
        %1390 = vmatpush2.msra.mxu0 0.0
        %1391 = vmatprep.subr.mxu0 0.0
        %1392 = vmatpush2.msra.mxu0 0.0
        %1393 = vmatprep.subr.mxu0 0.0
        %1394 = vmatpush2.msra.mxu0 0.0
        %1395 = vmatprep.subr.mxu0 0.0
        %1396 = vmatpush2.msra.mxu0 0.0
        %1397 = vmatprep.subr.mxu0 0.0
        %1398 = vmatpush2.msra.mxu0 0.0
        %1399 = vmatprep.subr.mxu0 0.0
        %1400 = vmatpush2.msra.mxu0 0.0
        %1401 = vmatprep.subr.mxu0 0.0
        %1402 = vmatpush2.msra.mxu0 0.0
        %1403 = vmatprep.subr.mxu0 0.0
        %1404 = vmatpush2.msra.mxu0 0.0
        %1405 = vmatprep.subr.mxu0 0.0
        %1406 = vmatpush2.msra.mxu0 0.0
        %1407 = vmatprep.subr.mxu0 0.0
        %1408 = vmatpush2.msra.mxu0 0.0
        %1409 = vmatprep.subr.mxu0 0.0
        %1410 = vmatpush2.msra.mxu0 0.0
        %1411 = vmatprep.subr.mxu0 0.0
        %1412 = vmatpush2.msra.mxu0 0.0
        %1413 = vmatprep.subr.mxu0 0.0
        %1414 = vmatpush2.msra.mxu0 0.0
        %1415 = vmatprep.subr.mxu0 0.0
        %1416 = vmatpush2.msra.mxu0 0.0
        %1417 = vmatprep.subr.mxu0 0.0
        %1418 = vmatpush2.msra.mxu0 0.0
        %1419 = vmatprep.mubr.f32.mxu0 0.0
        %1420 = vmatmul.mubr.f32.gmra.mxu0 %v1353
        %v1421 = vpop.f32.mrf.mxu0
        %v1422 = vadd.f32 0.0, %v1421
        %v1423 = vpop.f32.mrf.mxu0
        %1424 = vdwg.mxu0
        %v1425 = vadd.f32 %v1351, %v1422
        %1426 = vst.msk [vmem:[%s1344] sm:$0xff] %vm638, %v1425
        %1427 = vst.msk [vmem:[%s1319] sm:$0xff] %vm776, %v1324
        %p1428 = scmp.eq.s32.totalorder %s36, 1
        // Predicated region
        $region77: #{tpu_custom_call.1} parent=51 // pred_check
          %p1429 = pneg %p1428
        $region78: #{tpu_custom_call.1} parent=51 // pred_check_branch
          %1431 = sbr.rel (%p1429) target = $region80
        $region79: #{tpu_custom_call.1} parent=51 // pred_region
          %v1432 = vld [vmem:[#allocation6] sm:$0xff]
          %v1433 = vrcp.pop %v1432
          %v1434 = vld [vmem:[#allocation7] sm:$0xff]
          %1436 = vset.pattern.permute.xlu0 0
          %1437 = vperm.xlu0 %1436, %v1433
          %v1438 = vpop.permute.xlu0 %1437
          %v1440 = vmul.f32 %v1434, %v1438
          %v1441 = vld [vmem:[#allocation16] sm:$0xff]
          %v1442 = vld [vmem:[%s958] sm:$0xff]
          %v1443 = vrcp.pop %v1442
          %v1444 = vld [vmem:[%s966] sm:$0xff]
          %1446 = vset.pattern.permute.xlu0 0
          %1447 = vperm.xlu0 %1446, %v1443
          %v1448 = vpop.permute.xlu0 %1447
          %v1450 = vmul.f32 %v1444, %v1448
          %s1451 = scalar_lea.vmem [#allocation16], 8
          %v1452 = vld [vmem:[%s1451] sm:$0xff]
          %v1454 = vsel %vm638, %v1450, 0
          %1456 = vmatprep.subr.mxu0 0.0
          %1457 = vmatpush1.msra.mxu0 0.0
          %1458 = vmatprep.subr.mxu0 0.0
          %1459 = vmatpush1.msra.mxu0 0.0
          %1460 = vmatprep.subr.mxu0 0.0
          %1461 = vmatpush1.msra.mxu0 0.0
          %1462 = vmatprep.subr.mxu0 0.0
          %1463 = vmatpush1.msra.mxu0 0.0
          %1464 = vmatprep.subr.mxu0 0.0
          %1465 = vmatpush1.msra.mxu0 0.0
          %1466 = vmatprep.subr.mxu0 0.0
          %1467 = vmatpush1.msra.mxu0 0.0
          %1468 = vmatprep.subr.mxu0 0.0
          %1469 = vmatpush1.msra.mxu0 0.0
          %1470 = vmatprep.subr.mxu0 0.0
          %1471 = vmatpush1.msra.mxu0 0.0
          %1472 = vmatprep.subr.mxu0 0.0
          %1473 = vmatpush1.msra.mxu0 0.0
          %1474 = vmatprep.subr.mxu0 0.0
          %1475 = vmatpush1.msra.mxu0 0.0
          %1476 = vmatprep.subr.mxu0 0.0
          %1477 = vmatpush1.msra.mxu0 0.0
          %1478 = vmatprep.subr.mxu0 0.0
          %1479 = vmatpush1.msra.mxu0 0.0
          %1480 = vmatprep.subr.mxu0 0.0
          %1481 = vmatpush1.msra.mxu0 0.0
          %1482 = vmatprep.subr.mxu0 0.0
          %1483 = vmatpush1.msra.mxu0 0.0
          %1484 = vmatprep.subr.mxu0 0.0
          %1485 = vmatpush1.msra.mxu0 0.0
          %1486 = vmatprep.subr.mxu0 0.0
          %1487 = vmatpush1.msra.mxu0 %v1452
          %1488 = vmatprep.subr.mxu0 0.0
          %1489 = vmatpush2.msra.mxu0 0.0
          %1490 = vmatprep.subr.mxu0 0.0
          %1491 = vmatpush2.msra.mxu0 0.0
          %1492 = vmatprep.subr.mxu0 0.0
          %1493 = vmatpush2.msra.mxu0 0.0
          %1494 = vmatprep.subr.mxu0 0.0
          %1495 = vmatpush2.msra.mxu0 0.0
          %1496 = vmatprep.subr.mxu0 0.0
          %1497 = vmatpush2.msra.mxu0 0.0
          %1498 = vmatprep.subr.mxu0 0.0
          %1499 = vmatpush2.msra.mxu0 0.0
          %1500 = vmatprep.subr.mxu0 0.0
          %1501 = vmatpush2.msra.mxu0 0.0
          %1502 = vmatprep.subr.mxu0 0.0
          %1503 = vmatpush2.msra.mxu0 0.0
          %1504 = vmatprep.subr.mxu0 0.0
          %1505 = vmatpush2.msra.mxu0 0.0
          %1506 = vmatprep.subr.mxu0 0.0
          %1507 = vmatpush2.msra.mxu0 0.0
          %1508 = vmatprep.subr.mxu0 0.0
          %1509 = vmatpush2.msra.mxu0 0.0
          %1510 = vmatprep.subr.mxu0 0.0
          %1511 = vmatpush2.msra.mxu0 0.0
          %1512 = vmatprep.subr.mxu0 0.0
          %1513 = vmatpush2.msra.mxu0 0.0
          %1514 = vmatprep.subr.mxu0 0.0
          %1515 = vmatpush2.msra.mxu0 0.0
          %1516 = vmatprep.subr.mxu0 0.0
          %1517 = vmatpush2.msra.mxu0 0.0
          %1518 = vmatprep.subr.mxu0 0.0
          %1519 = vmatpush2.msra.mxu0 0.0
          %1520 = vmatprep.mubr.f32.mxu0 0.0
          %1521 = vmatmul.mubr.f32.gmra.mxu0 %v1454
          %v1522 = vpop.f32.mrf.mxu0
          %v1523 = vadd.f32 0.0, %v1522
          %v1524 = vpop.f32.mrf.mxu0
          %1525 = vdwg.mxu0
          %v1527 = vsel %vm638, %v1440, 0
          %1529 = vmatprep.subr.mxu0 0.0
          %1530 = vmatpush1.msra.mxu0 0.0
          %1531 = vmatprep.subr.mxu0 0.0
          %1532 = vmatpush1.msra.mxu0 0.0
          %1533 = vmatprep.subr.mxu0 0.0
          %1534 = vmatpush1.msra.mxu0 0.0
          %1535 = vmatprep.subr.mxu0 0.0
          %1536 = vmatpush1.msra.mxu0 0.0
          %1537 = vmatprep.subr.mxu0 0.0
          %1538 = vmatpush1.msra.mxu0 0.0
          %1539 = vmatprep.subr.mxu0 0.0
          %1540 = vmatpush1.msra.mxu0 0.0
          %1541 = vmatprep.subr.mxu0 0.0
          %1542 = vmatpush1.msra.mxu0 0.0
          %1543 = vmatprep.subr.mxu0 0.0
          %1544 = vmatpush1.msra.mxu0 0.0
          %1545 = vmatprep.subr.mxu0 0.0
          %1546 = vmatpush1.msra.mxu0 0.0
          %1547 = vmatprep.subr.mxu0 0.0
          %1548 = vmatpush1.msra.mxu0 0.0
          %1549 = vmatprep.subr.mxu0 0.0
          %1550 = vmatpush1.msra.mxu0 0.0
          %1551 = vmatprep.subr.mxu0 0.0
          %1552 = vmatpush1.msra.mxu0 0.0
          %1553 = vmatprep.subr.mxu0 0.0
          %1554 = vmatpush1.msra.mxu0 0.0
          %1555 = vmatprep.subr.mxu0 0.0
          %1556 = vmatpush1.msra.mxu0 0.0
          %1557 = vmatprep.subr.mxu0 0.0
          %1558 = vmatpush1.msra.mxu0 0.0
          %1559 = vmatprep.subr.mxu0 0.0
          %1560 = vmatpush1.msra.mxu0 %v1441
          %1561 = vmatprep.subr.mxu0 0.0
          %1562 = vmatpush2.msra.mxu0 0.0
          %1563 = vmatprep.subr.mxu0 0.0
          %1564 = vmatpush2.msra.mxu0 0.0
          %1565 = vmatprep.subr.mxu0 0.0
          %1566 = vmatpush2.msra.mxu0 0.0
          %1567 = vmatprep.subr.mxu0 0.0
          %1568 = vmatpush2.msra.mxu0 0.0
          %1569 = vmatprep.subr.mxu0 0.0
          %1570 = vmatpush2.msra.mxu0 0.0
          %1571 = vmatprep.subr.mxu0 0.0
          %1572 = vmatpush2.msra.mxu0 0.0
          %1573 = vmatprep.subr.mxu0 0.0
          %1574 = vmatpush2.msra.mxu0 0.0
          %1575 = vmatprep.subr.mxu0 0.0
          %1576 = vmatpush2.msra.mxu0 0.0
          %1577 = vmatprep.subr.mxu0 0.0
          %1578 = vmatpush2.msra.mxu0 0.0
          %1579 = vmatprep.subr.mxu0 0.0
          %1580 = vmatpush2.msra.mxu0 0.0
          %1581 = vmatprep.subr.mxu0 0.0
          %1582 = vmatpush2.msra.mxu0 0.0
          %1583 = vmatprep.subr.mxu0 0.0
          %1584 = vmatpush2.msra.mxu0 0.0
          %1585 = vmatprep.subr.mxu0 0.0
          %1586 = vmatpush2.msra.mxu0 0.0
          %1587 = vmatprep.subr.mxu0 0.0
          %1588 = vmatpush2.msra.mxu0 0.0
          %1589 = vmatprep.subr.mxu0 0.0
          %1590 = vmatpush2.msra.mxu0 0.0
          %1591 = vmatprep.subr.mxu0 0.0
          %1592 = vmatpush2.msra.mxu0 0.0
          %1593 = vmatprep.mubr.f32.mxu0 0.0
          %1594 = vmatmul.mubr.f32.gmra.mxu0 %v1527
          %v1595 = vpop.f32.mrf.mxu0
          %v1596 = vadd.f32 %v1523, %v1595
          %v1597 = vpop.f32.mrf.mxu0
          %1598 = vdwg.mxu0
          %v1599 = vld [vmem:[%s1147] sm:$0xff]
          %v1600 = vrcp.pop %v1599
          %v1601 = vld [vmem:[%s1155] sm:$0xff]
          %1603 = vset.pattern.permute.xlu0 0
          %1604 = vperm.xlu0 %1603, %v1600
          %v1605 = vpop.permute.xlu0 %1604
          %v1607 = vmul.f32 %v1601, %v1605
          %s1608 = scalar_lea.vmem [#allocation16], 16
          %v1609 = vld [vmem:[%s1608] sm:$0xff]
          %v1611 = vsel %vm638, %v1607, 0
          %1613 = vmatprep.subr.mxu0 0.0
          %1614 = vmatpush1.msra.mxu0 0.0
          %1615 = vmatprep.subr.mxu0 0.0
          %1616 = vmatpush1.msra.mxu0 0.0
          %1617 = vmatprep.subr.mxu0 0.0
          %1618 = vmatpush1.msra.mxu0 0.0
          %1619 = vmatprep.subr.mxu0 0.0
          %1620 = vmatpush1.msra.mxu0 0.0
          %1621 = vmatprep.subr.mxu0 0.0
          %1622 = vmatpush1.msra.mxu0 0.0
          %1623 = vmatprep.subr.mxu0 0.0
          %1624 = vmatpush1.msra.mxu0 0.0
          %1625 = vmatprep.subr.mxu0 0.0
          %1626 = vmatpush1.msra.mxu0 0.0
          %1627 = vmatprep.subr.mxu0 0.0
          %1628 = vmatpush1.msra.mxu0 0.0
          %1629 = vmatprep.subr.mxu0 0.0
          %1630 = vmatpush1.msra.mxu0 0.0
          %1631 = vmatprep.subr.mxu0 0.0
          %1632 = vmatpush1.msra.mxu0 0.0
          %1633 = vmatprep.subr.mxu0 0.0
          %1634 = vmatpush1.msra.mxu0 0.0
          %1635 = vmatprep.subr.mxu0 0.0
          %1636 = vmatpush1.msra.mxu0 0.0
          %1637 = vmatprep.subr.mxu0 0.0
          %1638 = vmatpush1.msra.mxu0 0.0
          %1639 = vmatprep.subr.mxu0 0.0
          %1640 = vmatpush1.msra.mxu0 0.0
          %1641 = vmatprep.subr.mxu0 0.0
          %1642 = vmatpush1.msra.mxu0 0.0
          %1643 = vmatprep.subr.mxu0 0.0
          %1644 = vmatpush1.msra.mxu0 %v1609
          %1645 = vmatprep.subr.mxu0 0.0
          %1646 = vmatpush2.msra.mxu0 0.0
          %1647 = vmatprep.subr.mxu0 0.0
          %1648 = vmatpush2.msra.mxu0 0.0
          %1649 = vmatprep.subr.mxu0 0.0
          %1650 = vmatpush2.msra.mxu0 0.0
          %1651 = vmatprep.subr.mxu0 0.0
          %1652 = vmatpush2.msra.mxu0 0.0
          %1653 = vmatprep.subr.mxu0 0.0
          %1654 = vmatpush2.msra.mxu0 0.0
          %1655 = vmatprep.subr.mxu0 0.0
          %1656 = vmatpush2.msra.mxu0 0.0
          %1657 = vmatprep.subr.mxu0 0.0
          %1658 = vmatpush2.msra.mxu0 0.0
          %1659 = vmatprep.subr.mxu0 0.0
          %1660 = vmatpush2.msra.mxu0 0.0
          %1661 = vmatprep.subr.mxu0 0.0
          %1662 = vmatpush2.msra.mxu0 0.0
          %1663 = vmatprep.subr.mxu0 0.0
          %1664 = vmatpush2.msra.mxu0 0.0
          %1665 = vmatprep.subr.mxu0 0.0
          %1666 = vmatpush2.msra.mxu0 0.0
          %1667 = vmatprep.subr.mxu0 0.0
          %1668 = vmatpush2.msra.mxu0 0.0
          %1669 = vmatprep.subr.mxu0 0.0
          %1670 = vmatpush2.msra.mxu0 0.0
          %1671 = vmatprep.subr.mxu0 0.0
          %1672 = vmatpush2.msra.mxu0 0.0
          %1673 = vmatprep.subr.mxu0 0.0
          %1674 = vmatpush2.msra.mxu0 0.0
          %1675 = vmatprep.subr.mxu0 0.0
          %1676 = vmatpush2.msra.mxu0 0.0
          %1677 = vmatprep.mubr.f32.mxu0 0.0
          %1678 = vmatmul.mubr.f32.gmra.mxu0 %v1611
          %v1679 = vpop.f32.mrf.mxu0
          %v1680 = vadd.f32 0.0, %v1679
          %v1681 = vpop.f32.mrf.mxu0
          %1682 = vdwg.mxu0
          %v1683 = vadd.f32 %v1596, %v1680
          %v1684 = vld [vmem:[%s1336] sm:$0xff]
          %v1685 = vrcp.pop %v1684
          %v1686 = vld [vmem:[%s1344] sm:$0xff]
          %1688 = vset.pattern.permute.xlu0 0
          %1689 = vperm.xlu0 %1688, %v1685
          %v1690 = vpop.permute.xlu0 %1689
          %v1692 = vmul.f32 %v1686, %v1690
          %s1693 = scalar_lea.vmem [#allocation16], 24
          %v1694 = vld [vmem:[%s1693] sm:$0xff]
          %v1696 = vsel %vm638, %v1692, 0
          %1698 = vmatprep.subr.mxu0 0.0
          %1699 = vmatpush1.msra.mxu0 0.0
          %1700 = vmatprep.subr.mxu0 0.0
          %1701 = vmatpush1.msra.mxu0 0.0
          %1702 = vmatprep.subr.mxu0 0.0
          %1703 = vmatpush1.msra.mxu0 0.0
          %1704 = vmatprep.subr.mxu0 0.0
          %1705 = vmatpush1.msra.mxu0 0.0
          %1706 = vmatprep.subr.mxu0 0.0
          %1707 = vmatpush1.msra.mxu0 0.0
          %1708 = vmatprep.subr.mxu0 0.0
          %1709 = vmatpush1.msra.mxu0 0.0
          %1710 = vmatprep.subr.mxu0 0.0
          %1711 = vmatpush1.msra.mxu0 0.0
          %1712 = vmatprep.subr.mxu0 0.0
          %1713 = vmatpush1.msra.mxu0 0.0
          %1714 = vmatprep.subr.mxu0 0.0
          %1715 = vmatpush1.msra.mxu0 0.0
          %1716 = vmatprep.subr.mxu0 0.0
          %1717 = vmatpush1.msra.mxu0 0.0
          %1718 = vmatprep.subr.mxu0 0.0
          %1719 = vmatpush1.msra.mxu0 0.0
          %1720 = vmatprep.subr.mxu0 0.0
          %1721 = vmatpush1.msra.mxu0 0.0
          %1722 = vmatprep.subr.mxu0 0.0
          %1723 = vmatpush1.msra.mxu0 0.0
          %1724 = vmatprep.subr.mxu0 0.0
          %1725 = vmatpush1.msra.mxu0 0.0
          %1726 = vmatprep.subr.mxu0 0.0
          %1727 = vmatpush1.msra.mxu0 0.0
          %1728 = vmatprep.subr.mxu0 0.0
          %1729 = vmatpush1.msra.mxu0 %v1694
          %1730 = vmatprep.subr.mxu0 0.0
          %1731 = vmatpush2.msra.mxu0 0.0
          %1732 = vmatprep.subr.mxu0 0.0
          %1733 = vmatpush2.msra.mxu0 0.0
          %1734 = vmatprep.subr.mxu0 0.0
          %1735 = vmatpush2.msra.mxu0 0.0
          %1736 = vmatprep.subr.mxu0 0.0
          %1737 = vmatpush2.msra.mxu0 0.0
          %1738 = vmatprep.subr.mxu0 0.0
          %1739 = vmatpush2.msra.mxu0 0.0
          %1740 = vmatprep.subr.mxu0 0.0
          %1741 = vmatpush2.msra.mxu0 0.0
          %1742 = vmatprep.subr.mxu0 0.0
          %1743 = vmatpush2.msra.mxu0 0.0
          %1744 = vmatprep.subr.mxu0 0.0
          %1745 = vmatpush2.msra.mxu0 0.0
          %1746 = vmatprep.subr.mxu0 0.0
          %1747 = vmatpush2.msra.mxu0 0.0
          %1748 = vmatprep.subr.mxu0 0.0
          %1749 = vmatpush2.msra.mxu0 0.0
          %1750 = vmatprep.subr.mxu0 0.0
          %1751 = vmatpush2.msra.mxu0 0.0
          %1752 = vmatprep.subr.mxu0 0.0
          %1753 = vmatpush2.msra.mxu0 0.0
          %1754 = vmatprep.subr.mxu0 0.0
          %1755 = vmatpush2.msra.mxu0 0.0
          %1756 = vmatprep.subr.mxu0 0.0
          %1757 = vmatpush2.msra.mxu0 0.0
          %1758 = vmatprep.subr.mxu0 0.0
          %1759 = vmatpush2.msra.mxu0 0.0
          %1760 = vmatprep.subr.mxu0 0.0
          %1761 = vmatpush2.msra.mxu0 0.0
          %1762 = vmatprep.mubr.f32.mxu0 0.0
          %1763 = vmatmul.mubr.f32.gmra.mxu0 %v1696
          %v1764 = vpop.f32.mrf.mxu0
          %v1765 = vadd.f32 0.0, %v1764
          %v1766 = vpop.f32.mrf.mxu0
          %1767 = vdwg.mxu0
          %v1768 = vadd.f32 %v1683, %v1765
          %v1769 = vld [vmem:[%s7] sm:$0x1]
          %v1771 = vlaneseq
          %v1772 = vshrl.u32 %v1771, 7
          %v1773 = vsub.s32 0, %v1772
          %v1774 = vrot.slane %v1769, %v1773
          %v1776 = vadd.f32 %v1768, %v1774
          %1777 = vst.msk [vmem:[%s429] sm:$0xff] %vm564, %v1776
        $region80: #{tpu_custom_call.1} parent=51 // pred_fallthru
          _
        %s1778 = sand.u32 %s240, 1
        %s1779 = scalar_lea.sflag [#allocation10], %s1778
        %s1780 = sand.u32 %s240, 1
        %s1781 = smul.addr %s1780, 8
        %s1782 = scalar_lea.vmem [#allocation17], %s1781
        // Predicated region
        $region81: #{tpu_custom_call.1} parent=51 // pred_check
          %p1783 = pneg %p250
        $region82: #{tpu_custom_call.1} parent=51 // pred_check_branch
          %1785 = sbr.rel (%p1783) target = $region84
        $region83: #{tpu_custom_call.1} parent=51 // pred_region
          %s1787 = ssub.s32 128, 128
          %1788 = vsyncadd %s1779, %s1787
          %s1789 = smul.addr %s34, 2
          %s1790 = sadd.s32 %s35, %s1789
          %s1791 = smul.addr %s1790, 128
          %s1792 = scalar_lea.hbm %s8, %s1791
          %s1794 = sshll.u32 %s1782, 4
          %s1795 = int_to_ptr.vmem [resolvable:$true] %s1794
          %1797 = dma.vmem_to_hbm [thread:$0]  %s1795, 128, %s1792, %s1779
        $region84: #{tpu_custom_call.1} parent=51 // pred_fallthru
          _
      $region52: #{tpu_custom_call.1} parent=5 // pred_fallthru
        _
      %p1798 = scmp.le.s32.totalorder 2, %s24
      // Predicated region
      $region85: #{tpu_custom_call.1} parent=5 // pred_check
        %p1799 = pneg %p1798
      $region86: #{tpu_custom_call.1} parent=5 // pred_check_branch
        %1801 = sbr.rel (%p1799) target = $region88
      $region87: #{tpu_custom_call.1} parent=5 // pred_region
        %s1802 = ssub.s32 %s24, 2
        // Predicated region
        $region89: #{tpu_custom_call.1} parent=87 // pred_check
          %p1803 = pneg %p256
        $region90: #{tpu_custom_call.1} parent=87 // pred_check_branch
          %1805 = sbr.rel (%p1803) target = $region92
        $region91: #{tpu_custom_call.1} parent=87 // pred_region
          %s1806 = sand.u32 %s241, 1
          %s1807 = scalar_lea.sflag [#allocation10], %s1806
          %s1808 = sand.u32 %s241, 1
          %s1809 = smul.addr %s1808, 8
          %s1810 = scalar_lea.vmem [#allocation17], %s1809
          %1811 = dma.done %s1807, 128
        $region92: #{tpu_custom_call.1} parent=87 // pred_fallthru
          _
      $region88: #{tpu_custom_call.1} parent=5 // pred_fallthru
        _
    $region6: #{tpu_custom_call.1} parent=1 // loop_footer
      %s28 = sadd.s32 1, %s24
    $region7: #{tpu_custom_call.1} parent=1 // loop_footer_branch
      %23 = sbr.rel target = $region3
    $region8: #{tpu_custom_call.1} parent=1 // loop_exit
      _
    %1812 = vsyncpa [#allocation9], 1
    %s1813 = scalar_lea.sflag [#allocation9], 1
    %1814 = vsyncpa %s1813, 1
    %1815 = vsyncpa [#allocation12], 1
    %s1816 = scalar_lea.sflag [#allocation12], 1
    %1817 = vsyncpa %s1816, 1
    %1818 = vsyncpa [#allocation15], 1
    %1819 = vsyncpa [#allocation10], 1
    %s1820 = scalar_lea.sflag [#allocation10], 1
    %1821 = vsyncpa %s1820, 1

</llo_original>
